<compile_context>
chip_gen: v7x
topology: tpu7x:2x2x1
jax: 0.10.0
libtpu: 0.0.40
codegen_flags: <defaults>
</compile_context>

<pallas_src>
import jax
import jax.numpy as jnp
from jax.experimental import pallas as pl
from jax.experimental.pallas import tpu as pltpu  # noqa: F401  (TPU backend)

# ----------------------------- configuration -------------------------------
N_NODES = 64                     # number of graph nodes
HIDDEN = 32                      # hidden_size
F_IN = 24                        # initial node feature size (< HIDDEN -> padded)
LAYER_TIMESTEPS = (2, 2)
RESIDUAL_CONNECTIONS = {1: [0]}  # layer 1 gets a residual from node_states[0]
NUM_EDGE_TYPES = 1               # unused in forward (kept for parity)

_ALIGN = 16   # bf16 sublane-pack tile is (16, 128); keep every block aligned


# --------------------------- packing layout ---------------------------------
def _pack_layout(H, F, layer_timesteps, residual_connections):
    """Row offsets (all multiples of 16) for every block in the (rows, 3H) slab."""
    off = {}
    cursor = 0

    def add(key, rows):
        nonlocal cursor
        off[key] = cursor
        cursor += -(-rows // _ALIGN) * _ALIGN

    add('pad', F)            # (F, H)  projection [I_F | 0]  (state init only)
    add('wmsg', F)           # (F, H)  message weight, pad folded: w[:F, :]
    add('bmsg', 1)           # (1, H)  message bias
    for li in range(len(layer_timesteps)):
        n_blocks = 1 + len(residual_connections.get(li, []))
        for blk in range(n_blocks):
            add(('wih', li, blk), H)    # (H, 3H)  fused gates r|z|n
        add(('whh', li), H)             # (H, 3H)  fused gates r|z|n
        add(('bx', li), 1)              # (1, 3H)  [b_ir+b_hr | b_iz+b_hz | b_in]
        add(('bhn', li), 1)             # (1, H)   b_hn (stays inside loop)
    return off, cursor


def pack_params(params, H, F, layer_timesteps, residual_connections,
                dtype=jnp.bfloat16):
    """Convert torch-style params into the single packed slab the kernel reads."""
    w, b, gru = params
    off, rows = _pack_layout(H, F, layer_timesteps, residual_connections)
    slab = jnp.zeros((rows, 3 * H), jnp.float32)

    def put(key, mat):
        nonlocal slab
        r0 = off[key]
        slab = slab.at[r0:r0 + mat.shape[0], :mat.shape[1]].set(mat)

    put('pad', jnp.eye(F, H, dtype=jnp.float32))          # [I_F | 0]
    put('wmsg', w[:F, :])                                  # pad folded
    put('bmsg', b[None, :])
    for li, (wih, whh, bih, bhh) in enumerate(gru):
        n_blocks = 1 + len(residual_connections.get(li, []))
        for blk in range(n_blocks):
            # column group g holds gate g's weights for this input block
            wih_blk = jnp.concatenate(
                [wih[g * H:(g + 1) * H, blk * H:(blk + 1) * H].T
                 for g in range(3)], axis=1)               # (H, 3H)
            put(('wih', li, blk), wih_blk)
        whh_all = jnp.concatenate(
            [whh[g * H:(g + 1) * H, :].T for g in range(3)], axis=1)  # (H, 3H)
        put(('whh', li), whh_all)
        bx = jnp.concatenate([bih[0:H] + bhh[0:H],
                              bih[H:2 * H] + bhh[H:2 * H],
                              bih[2 * H:3 * H]])            # (3H,)
        put(('bx', li), bx[None, :])
        put(('bhn', li), bhh[2 * H:3 * H][None, :])
    return slab.astype(dtype)


# ------------------------------- kernel ------------------------------------
def _make_kernel(H, F, N, layer_timesteps, residual_connections):
    off, _ = _pack_layout(H, F, layer_timesteps, residual_connections)
    n_layers = len(layer_timesteps)
    W3 = 3 * H
    bf16, f32 = jnp.bfloat16, jnp.float32

    def kernel(x_ref, adj_ref, slab_ref, out_ref):
        def sl(key, rows, cols):                 # static slab slice (16-aligned)
            r0 = off[key]
            return slab_ref[r0:r0 + rows, :cols]

        x = x_ref[...]                           # (N, F)  bf16
        adj = adj_ref[...]                       # (N, N)  bf16

        # x0 = [x | 0]  (only needed as the initial GRU state / residual)
        x0 = jnp.dot(x, sl('pad', F, H), preferred_element_type=f32)

        # Message GCN (loop-invariant, pad folded): msg = adj @ (x @ w[:F]) + b
        support = jnp.dot(x, sl('wmsg', F, H), preferred_element_type=f32)
        msg = jnp.dot(adj, support.astype(bf16), preferred_element_type=f32)
        msg = msg + sl('bmsg', 1, H).astype(f32)

        states = [x0]                            # node_states_per_layer
        h = x0
        for li in range(n_layers):
            blocks = [states[r] for r in residual_connections.get(li, [])] + [msg]

            # Hoisted fused input-to-hidden pre-activations (r|z|n along lanes).
            gx_all = sl(('bx', li), 1, W3).astype(f32)
            for bi, xin in enumerate(blocks):
                gx_all = gx_all + jnp.dot(xin.astype(bf16),
                                          sl(('wih', li, bi), H, W3),
                                          preferred_element_type=f32)
            gx_rz = gx_all[:, :2 * H]            # prefix lane slice (free)
            gx_n = gx_all[:, 2 * H:]             # one-time lane extraction

            whh_all = sl(('whh', li), H, W3)     # (H, 3H) fused hidden weights
            b_hn = sl(('bhn', li), 1, H).astype(f32)

            h = states[-1]                       # node_states_for_this_layer
            for _t in range(layer_timesteps[li]):        # static unroll
                # Single fused hidden->hidden MXU push; gates at lanes 0/H/2H.
                gh = jnp.dot(h.astype(bf16), whh_all,
                             preferred_element_type=f32)          # (N, 3H)
                rz = jax.nn.sigmoid(gx_rz + gh[:, :2 * H])        # r|z slab
                r_g = rz[:, :H]
                z_g = rz[:, H:2 * H]
                n_g = jnp.tanh(gx_n + r_g * (gh[:, 2 * H:] + b_hn))
                h = n_g + z_g * (h - n_g)        # == (1-z)*n + z*h
                # rnn_dropout_layer -> identity (inference)
            states.append(h)

        out_ref[...] = h.astype(out_ref.dtype)

    return kernel


# ------------------------------- wrapper ------------------------------------
def ggcn_forward(x, adj, w_slab):
    """Pallas forward pass. Returns node states of the last layer, (N, H) f32."""
    N, F = x.shape
    H = HIDDEN
    kernel = _make_kernel(H, F, N, LAYER_TIMESTEPS, RESIDUAL_CONNECTIONS)
    # No grid, no BlockSpecs: whole arrays are staged into VMEM (3 input DMAs).
    return pl.pallas_call(
        kernel,
        out_shape=jax.ShapeDtypeStruct((N, H), jnp.float32),
    )(x.astype(jnp.bfloat16), adj.astype(jnp.bfloat16), w_slab)


# --------------------------- parameter creation ------------------------------
def init_params(key, H, layer_timesteps, residual_connections):
    """torch-style parameters: message W/b + per-layer GRUCell wih/whh/bih/bhh."""
    stdv = 1.0 / (H ** 0.5)
    n_layers = len(layer_timesteps)
    keys = jax.random.split(key, 2 + 4 * n_layers)
    w = jax.random.uniform(keys[0], (H, H), jnp.float32, -stdv, stdv)
    b = jax.random.uniform(keys[1], (H,), jnp.float32, -stdv, stdv)
    gru = []
    k = 2
    for li in range(n_layers):
        d_in = H * (1 + len(residual_connections.get(li, [])))
        wih = jax.random.uniform(keys[k + 0], (3 * H, d_in), jnp.float32, -stdv, stdv)
        whh = jax.random.uniform(keys[k + 1], (3 * H, H), jnp.float32, -stdv, stdv)
        bih = jax.random.uniform(keys[k + 2], (3 * H,), jnp.float32, -stdv, stdv)
        bhh = jax.random.uniform(keys[k + 3], (3 * H,), jnp.float32, -stdv, stdv)
        gru.append((wih, whh, bih, bhh))
        k += 4
    return (w, b, gru)


# ------------------------- pure-JAX reference --------------------------------
def ggcn_reference(x, adj, params):
    """Mirrors the PyTorch module literally (f32 everywhere, concat, full 3H
    matmuls, msg recomputed every timestep)."""
    H = HIDDEN
    w, b, gru = params
    x = x.astype(jnp.float32)
    N, F = x.shape
    if F < H:
        x = jnp.concatenate([x, jnp.zeros((N, H - F), jnp.float32)], axis=-1)
    node_states = [x]
    for li, nt in enumerate(LAYER_TIMESTEPS):
        wih, whh, bih, bhh = gru[li]
        res_states = [node_states[r] for r in RESIDUAL_CONNECTIONS.get(li, [])]
        h = node_states[-1]
        for _t in range(nt):
            msg = adj @ (x @ w) + b                       # message_gcn(initial repr)
            xin = jnp.concatenate(res_states + [msg], axis=-1)
            gx = xin @ wih.T + bih
            gh = h @ whh.T + bhh
            r = jax.nn.sigmoid(gx[:, :H] + gh[:, :H])
            z = jax.nn.sigmoid(gx[:, H:2 * H] + gh[:, H:2 * H])
            n = jnp.tanh(gx[:, 2 * H:] + r * gh[:, 2 * H:])
            h = (1.0 - z) * n + z * h
        node_states.append(h)
    return node_states[-1]


# --------------------------------- main --------------------------------------
if __name__ == "__main__":
    key = jax.random.PRNGKey(0)
    k_x, k_p = jax.random.split(key, 2)

    # Initial node representations (features < hidden_size -> padded in kernel).
    x_init = jax.random.normal(k_x, (N_NODES, F_IN), jnp.float32)

    # Deterministic "sparse" adjacency: ring graph + self loops, row-normalized.
    eye = jnp.eye(N_NODES, dtype=jnp.float32)
    ring = jnp.roll(eye, 1, axis=1) + jnp.roll(eye, -1, axis=1)
    adj = eye + ring
    adj = adj / jnp.sum(adj, axis=1, keepdims=True)

    params = init_params(k_p, HIDDEN, LAYER_TIMESTEPS, RESIDUAL_CONNECTIONS)
    w_slab = pack_params(params, HIDDEN, F_IN,
                         LAYER_TIMESTEPS, RESIDUAL_CONNECTIONS)

    out = jax.block_until_ready(ggcn_forward(x_init, adj, w_slab))
    ref = jax.block_until_ready(ggcn_reference(x_init, adj, params))

    assert out.shape == (N_NODES, HIDDEN) and out.dtype == jnp.float32
    # bf16 matmul operands (f32 accumulate) are a deliberate, reviewed numerics
    # change; validate against the f32 reference at a correspondingly looser
    # tolerance.
    max_diff = float(jnp.max(jnp.abs(out - ref)))
    assert jnp.allclose(out, ref, rtol=2e-2, atol=2e-2), \
        f"max abs diff = {max_diff}"

    print("KERNEL_OK")
</pallas_src>

<mosaic_0001>
module attributes {stable_mosaic.version = 11 : i64} {
  func.func @kernel(%arg0: memref<64x24xbf16, #tpu.memory_space<vmem>>, %arg1: memref<64x64xbf16, #tpu.memory_space<vmem>>, %arg2: memref<304x96xbf16, #tpu.memory_space<vmem>>, %arg3: memref<64x32xf32, #tpu.memory_space<vmem>>) attributes {dimension_semantics = [], scalar_prefetch = 0 : i64, scratch_operands = 0 : i64, tpu.core_type = #tpu.core_type<tc>} {
    %c0 = arith.constant 0 : index
    %c0_0 = arith.constant 0 : index
    %0 = vector.load %arg0[%c0, %c0_0] : memref<64x24xbf16, #tpu.memory_space<vmem>>, vector<64x24xbf16>
    %c0_1 = arith.constant 0 : index
    %c0_2 = arith.constant 0 : index
    %1 = vector.load %arg1[%c0_1, %c0_2] : memref<64x64xbf16, #tpu.memory_space<vmem>>, vector<64x64xbf16>
    %c0_3 = arith.constant 0 : index
    %c0_4 = arith.constant 0 : index
    %2 = vector.load %arg2[%c0_3, %c0_4] : memref<304x96xbf16, #tpu.memory_space<vmem>>, vector<24x32xbf16>
    %cst = arith.constant dense<0.000000e+00> : vector<64x32xf32>
    %3 = tpu.matmul %0, %2, %cst {dimension_numbers = #tpu.dot_dimension_numbers<[1], [0], [0], [1], [0, 0, 1, 1], [], []>} : vector<64x24xbf16>, vector<24x32xbf16>, vector<64x32xf32> -> vector<64x32xf32>
    %c32 = arith.constant 32 : index
    %c0_5 = arith.constant 0 : index
    %4 = vector.load %arg2[%c32, %c0_5] : memref<304x96xbf16, #tpu.memory_space<vmem>>, vector<24x32xbf16>
    %cst_6 = arith.constant dense<0.000000e+00> : vector<64x32xf32>
    %5 = tpu.matmul %0, %4, %cst_6 {dimension_numbers = #tpu.dot_dimension_numbers<[1], [0], [0], [1], [0, 0, 1, 1], [], []>} : vector<64x24xbf16>, vector<24x32xbf16>, vector<64x32xf32> -> vector<64x32xf32>
    %6 = arith.truncf %5 : vector<64x32xf32> to vector<64x32xbf16>
    %cst_7 = arith.constant dense<0.000000e+00> : vector<64x32xf32>
    %7 = tpu.matmul %1, %6, %cst_7 {dimension_numbers = #tpu.dot_dimension_numbers<[1], [0], [0], [1], [0, 0, 1, 1], [], []>} : vector<64x64xbf16>, vector<64x32xbf16>, vector<64x32xf32> -> vector<64x32xf32>
    %c64 = arith.constant 64 : index
    %c0_8 = arith.constant 0 : index
    %8 = vector.load %arg2[%c64, %c0_8] : memref<304x96xbf16, #tpu.memory_space<vmem>>, vector<1x32xbf16>
    %9 = arith.extf %8 : vector<1x32xbf16> to vector<1x32xf32>
    %10 = vector.broadcast %9 : vector<1x32xf32> to vector<64x32xf32>
    %11 = arith.addf %7, %10 : vector<64x32xf32>
    %c144 = arith.constant 144 : index
    %c0_9 = arith.constant 0 : index
    %12 = vector.load %arg2[%c144, %c0_9] : memref<304x96xbf16, #tpu.memory_space<vmem>>, vector<1x96xbf16>
    %13 = arith.extf %12 : vector<1x96xbf16> to vector<1x96xf32>
    %14 = arith.truncf %11 : vector<64x32xf32> to vector<64x32xbf16>
    %c80 = arith.constant 80 : index
    %c0_10 = arith.constant 0 : index
    %15 = vector.load %arg2[%c80, %c0_10] : memref<304x96xbf16, #tpu.memory_space<vmem>>, vector<32x96xbf16>
    %cst_11 = arith.constant dense<0.000000e+00> : vector<64x96xf32>
    %16 = tpu.matmul %14, %15, %cst_11 {dimension_numbers = #tpu.dot_dimension_numbers<[1], [0], [0], [1], [0, 0, 1, 1], [], []>} : vector<64x32xbf16>, vector<32x96xbf16>, vector<64x96xf32> -> vector<64x96xf32>
    %17 = vector.broadcast %13 : vector<1x96xf32> to vector<64x96xf32>
    %18 = arith.addf %17, %16 : vector<64x96xf32>
    %19 = vector.extract_strided_slice %18 {offsets = [0, 0], sizes = [64, 64], strides = [1, 1]} : vector<64x96xf32> to vector<64x64xf32>
    %20 = vector.extract_strided_slice %18 {offsets = [0, 64], sizes = [64, 32], strides = [1, 1]} : vector<64x96xf32> to vector<64x32xf32>
    %c112 = arith.constant 112 : index
    %c0_12 = arith.constant 0 : index
    %21 = vector.load %arg2[%c112, %c0_12] : memref<304x96xbf16, #tpu.memory_space<vmem>>, vector<32x96xbf16>
    %c160 = arith.constant 160 : index
    %c0_13 = arith.constant 0 : index
    %22 = vector.load %arg2[%c160, %c0_13] : memref<304x96xbf16, #tpu.memory_space<vmem>>, vector<1x32xbf16>
    %23 = arith.extf %22 : vector<1x32xbf16> to vector<1x32xf32>
    %24 = arith.truncf %3 : vector<64x32xf32> to vector<64x32xbf16>
    %cst_14 = arith.constant dense<0.000000e+00> : vector<64x96xf32>
    %25 = tpu.matmul %24, %21, %cst_14 {dimension_numbers = #tpu.dot_dimension_numbers<[1], [0], [0], [1], [0, 0, 1, 1], [], []>} : vector<64x32xbf16>, vector<32x96xbf16>, vector<64x96xf32> -> vector<64x96xf32>
    %26 = vector.extract_strided_slice %25 {offsets = [0, 0], sizes = [64, 64], strides = [1, 1]} : vector<64x96xf32> to vector<64x64xf32>
    %27 = arith.addf %19, %26 : vector<64x64xf32>
    %28 = arith.negf %27 : vector<64x64xf32>
    %29 = math.exp %28 : vector<64x64xf32>
    %cst_15 = arith.constant 1.000000e+00 : f32
    %30 = vector.broadcast %cst_15 : f32 to vector<64x64xf32>
    %31 = arith.addf %30, %29 : vector<64x64xf32>
    %32 = arith.divf %30, %31 : vector<64x64xf32>
    %33 = vector.extract_strided_slice %32 {offsets = [0, 0], sizes = [64, 32], strides = [1, 1]} : vector<64x64xf32> to vector<64x32xf32>
    %34 = vector.extract_strided_slice %32 {offsets = [0, 32], sizes = [64, 32], strides = [1, 1]} : vector<64x64xf32> to vector<64x32xf32>
    %35 = vector.extract_strided_slice %25 {offsets = [0, 64], sizes = [64, 32], strides = [1, 1]} : vector<64x96xf32> to vector<64x32xf32>
    %36 = vector.broadcast %23 : vector<1x32xf32> to vector<64x32xf32>
    %37 = arith.addf %35, %36 : vector<64x32xf32>
    %38 = arith.mulf %33, %37 : vector<64x32xf32>
    %39 = arith.addf %20, %38 : vector<64x32xf32>
    %40 = math.tanh %39 : vector<64x32xf32>
    %41 = arith.subf %3, %40 : vector<64x32xf32>
    %42 = arith.mulf %34, %41 : vector<64x32xf32>
    %43 = arith.addf %40, %42 : vector<64x32xf32>
    %44 = arith.truncf %43 : vector<64x32xf32> to vector<64x32xbf16>
    %cst_16 = arith.constant dense<0.000000e+00> : vector<64x96xf32>
    %45 = tpu.matmul %44, %21, %cst_16 {dimension_numbers = #tpu.dot_dimension_numbers<[1], [0], [0], [1], [0, 0, 1, 1], [], []>} : vector<64x32xbf16>, vector<32x96xbf16>, vector<64x96xf32> -> vector<64x96xf32>
    %46 = vector.extract_strided_slice %45 {offsets = [0, 0], sizes = [64, 64], strides = [1, 1]} : vector<64x96xf32> to vector<64x64xf32>
    %47 = arith.addf %19, %46 : vector<64x64xf32>
    %48 = arith.negf %47 : vector<64x64xf32>
    %49 = math.exp %48 : vector<64x64xf32>
    %cst_17 = arith.constant 1.000000e+00 : f32
    %50 = vector.broadcast %cst_17 : f32 to vector<64x64xf32>
    %51 = arith.addf %50, %49 : vector<64x64xf32>
    %52 = arith.divf %50, %51 : vector<64x64xf32>
    %53 = vector.extract_strided_slice %52 {offsets = [0, 0], sizes = [64, 32], strides = [1, 1]} : vector<64x64xf32> to vector<64x32xf32>
    %54 = vector.extract_strided_slice %52 {offsets = [0, 32], sizes = [64, 32], strides = [1, 1]} : vector<64x64xf32> to vector<64x32xf32>
    %55 = vector.extract_strided_slice %45 {offsets = [0, 64], sizes = [64, 32], strides = [1, 1]} : vector<64x96xf32> to vector<64x32xf32>
    %56 = vector.broadcast %23 : vector<1x32xf32> to vector<64x32xf32>
    %57 = arith.addf %55, %56 : vector<64x32xf32>
    %58 = arith.mulf %53, %57 : vector<64x32xf32>
    %59 = arith.addf %20, %58 : vector<64x32xf32>
    %60 = math.tanh %59 : vector<64x32xf32>
    %61 = arith.subf %43, %60 : vector<64x32xf32>
    %62 = arith.mulf %54, %61 : vector<64x32xf32>
    %63 = arith.addf %60, %62 : vector<64x32xf32>
    %c272 = arith.constant 272 : index
    %c0_18 = arith.constant 0 : index
    %64 = vector.load %arg2[%c272, %c0_18] : memref<304x96xbf16, #tpu.memory_space<vmem>>, vector<1x96xbf16>
    %65 = arith.extf %64 : vector<1x96xbf16> to vector<1x96xf32>
    %66 = arith.truncf %3 : vector<64x32xf32> to vector<64x32xbf16>
    %c176 = arith.constant 176 : index
    %c0_19 = arith.constant 0 : index
    %67 = vector.load %arg2[%c176, %c0_19] : memref<304x96xbf16, #tpu.memory_space<vmem>>, vector<32x96xbf16>
    %cst_20 = arith.constant dense<0.000000e+00> : vector<64x96xf32>
    %68 = tpu.matmul %66, %67, %cst_20 {dimension_numbers = #tpu.dot_dimension_numbers<[1], [0], [0], [1], [0, 0, 1, 1], [], []>} : vector<64x32xbf16>, vector<32x96xbf16>, vector<64x96xf32> -> vector<64x96xf32>
    %69 = vector.broadcast %65 : vector<1x96xf32> to vector<64x96xf32>
    %70 = arith.addf %69, %68 : vector<64x96xf32>
    %71 = arith.truncf %11 : vector<64x32xf32> to vector<64x32xbf16>
    %c208 = arith.constant 208 : index
    %c0_21 = arith.constant 0 : index
    %72 = vector.load %arg2[%c208, %c0_21] : memref<304x96xbf16, #tpu.memory_space<vmem>>, vector<32x96xbf16>
    %cst_22 = arith.constant dense<0.000000e+00> : vector<64x96xf32>
    %73 = tpu.matmul %71, %72, %cst_22 {dimension_numbers = #tpu.dot_dimension_numbers<[1], [0], [0], [1], [0, 0, 1, 1], [], []>} : vector<64x32xbf16>, vector<32x96xbf16>, vector<64x96xf32> -> vector<64x96xf32>
    %74 = arith.addf %70, %73 : vector<64x96xf32>
    %75 = vector.extract_strided_slice %74 {offsets = [0, 0], sizes = [64, 64], strides = [1, 1]} : vector<64x96xf32> to vector<64x64xf32>
    %76 = vector.extract_strided_slice %74 {offsets = [0, 64], sizes = [64, 32], strides = [1, 1]} : vector<64x96xf32> to vector<64x32xf32>
    %c240 = arith.constant 240 : index
    %c0_23 = arith.constant 0 : index
    %77 = vector.load %arg2[%c240, %c0_23] : memref<304x96xbf16, #tpu.memory_space<vmem>>, vector<32x96xbf16>
    %c288 = arith.constant 288 : index
    %c0_24 = arith.constant 0 : index
    %78 = vector.load %arg2[%c288, %c0_24] : memref<304x96xbf16, #tpu.memory_space<vmem>>, vector<1x32xbf16>
    %79 = arith.extf %78 : vector<1x32xbf16> to vector<1x32xf32>
    %80 = arith.truncf %63 : vector<64x32xf32> to vector<64x32xbf16>
    %cst_25 = arith.constant dense<0.000000e+00> : vector<64x96xf32>
    %81 = tpu.matmul %80, %77, %cst_25 {dimension_numbers = #tpu.dot_dimension_numbers<[1], [0], [0], [1], [0, 0, 1, 1], [], []>} : vector<64x32xbf16>, vector<32x96xbf16>, vector<64x96xf32> -> vector<64x96xf32>
    %82 = vector.extract_strided_slice %81 {offsets = [0, 0], sizes = [64, 64], strides = [1, 1]} : vector<64x96xf32> to vector<64x64xf32>
    %83 = arith.addf %75, %82 : vector<64x64xf32>
    %84 = arith.negf %83 : vector<64x64xf32>
    %85 = math.exp %84 : vector<64x64xf32>
    %cst_26 = arith.constant 1.000000e+00 : f32
    %86 = vector.broadcast %cst_26 : f32 to vector<64x64xf32>
    %87 = arith.addf %86, %85 : vector<64x64xf32>
    %88 = arith.divf %86, %87 : vector<64x64xf32>
    %89 = vector.extract_strided_slice %88 {offsets = [0, 0], sizes = [64, 32], strides = [1, 1]} : vector<64x64xf32> to vector<64x32xf32>
    %90 = vector.extract_strided_slice %88 {offsets = [0, 32], sizes = [64, 32], strides = [1, 1]} : vector<64x64xf32> to vector<64x32xf32>
    %91 = vector.extract_strided_slice %81 {offsets = [0, 64], sizes = [64, 32], strides = [1, 1]} : vector<64x96xf32> to vector<64x32xf32>
    %92 = vector.broadcast %79 : vector<1x32xf32> to vector<64x32xf32>
    %93 = arith.addf %91, %92 : vector<64x32xf32>
    %94 = arith.mulf %89, %93 : vector<64x32xf32>
    %95 = arith.addf %76, %94 : vector<64x32xf32>
    %96 = math.tanh %95 : vector<64x32xf32>
    %97 = arith.subf %63, %96 : vector<64x32xf32>
    %98 = arith.mulf %90, %97 : vector<64x32xf32>
    %99 = arith.addf %96, %98 : vector<64x32xf32>
    %100 = arith.truncf %99 : vector<64x32xf32> to vector<64x32xbf16>
    %cst_27 = arith.constant dense<0.000000e+00> : vector<64x96xf32>
    %101 = tpu.matmul %100, %77, %cst_27 {dimension_numbers = #tpu.dot_dimension_numbers<[1], [0], [0], [1], [0, 0, 1, 1], [], []>} : vector<64x32xbf16>, vector<32x96xbf16>, vector<64x96xf32> -> vector<64x96xf32>
    %102 = vector.extract_strided_slice %101 {offsets = [0, 0], sizes = [64, 64], strides = [1, 1]} : vector<64x96xf32> to vector<64x64xf32>
    %103 = arith.addf %75, %102 : vector<64x64xf32>
    %104 = arith.negf %103 : vector<64x64xf32>
    %105 = math.exp %104 : vector<64x64xf32>
    %cst_28 = arith.constant 1.000000e+00 : f32
    %106 = vector.broadcast %cst_28 : f32 to vector<64x64xf32>
    %107 = arith.addf %106, %105 : vector<64x64xf32>
    %108 = arith.divf %106, %107 : vector<64x64xf32>
    %109 = vector.extract_strided_slice %108 {offsets = [0, 0], sizes = [64, 32], strides = [1, 1]} : vector<64x64xf32> to vector<64x32xf32>
    %110 = vector.extract_strided_slice %108 {offsets = [0, 32], sizes = [64, 32], strides = [1, 1]} : vector<64x64xf32> to vector<64x32xf32>
    %111 = vector.extract_strided_slice %101 {offsets = [0, 64], sizes = [64, 32], strides = [1, 1]} : vector<64x96xf32> to vector<64x32xf32>
    %112 = vector.broadcast %79 : vector<1x32xf32> to vector<64x32xf32>
    %113 = arith.addf %111, %112 : vector<64x32xf32>
    %114 = arith.mulf %109, %113 : vector<64x32xf32>
    %115 = arith.addf %76, %114 : vector<64x32xf32>
    %116 = math.tanh %115 : vector<64x32xf32>
    %117 = arith.subf %99, %116 : vector<64x32xf32>
    %118 = arith.mulf %110, %117 : vector<64x32xf32>
    %119 = arith.addf %116, %118 : vector<64x32xf32>
    %c0_29 = arith.constant 0 : index
    %c0_30 = arith.constant 0 : index
    %120 = vector.load %arg3[%c0_29, %c0_30] : memref<64x32xf32, #tpu.memory_space<vmem>>, vector<64x32xf32>
    tpu.vector_store %arg3[%c0_29, %c0_30], %119 {strides = array<i32>} : memref<64x32xf32, #tpu.memory_space<vmem>>, vector<64x32xf32>,
    return
  }
}

</mosaic_0001>

<llo_original>
// kernel: tpu_custom_call.1
$region0: #{tpu_custom_call.1}
  #allocation0 [shape = 'u32[]', space=smem, size = 0x4, offset = 0x4, fixed_abs, tag = 'smem constant byte address 0x4 - core index']
  #allocation1 [shape = 'u32[144,128]{1,0:T(1,128)}', space=vmem, size = 0x12000, scoped, tag = 'internal scratch']
  %s0 = inlined_call_operand.vmem [shape: bf16[64,24], index: 0, kind: input, shape index: {}]
  %s1 = inlined_call_operand.vmem [shape: bf16[64,64], index: 1, kind: input, shape index: {}]
  %s2 = inlined_call_operand.vmem [shape: bf16[304,96], index: 2, kind: input, shape index: {}]
  %s3 = inlined_call_operand.vmem [shape: f32[64,32], index: 3, kind: output, shape index: {}]
  %s4 = sld [smem:[#allocation0]]
  $region22: #{tpu_custom_call.1} parent=0
    _
  %s6 = ssub.s32 1, %s4
  %s7 = scalar_select 0, %s6, %s4
  // Predicated region
  $region2: #{tpu_custom_call.1} parent=0 // pred_check
    _
  $region3: #{tpu_custom_call.1} parent=0 // pred_check_branch
    %9 = sbr.rel (0) target = $region5
  $region4: #{tpu_custom_call.1} parent=0 // pred_region
    _
  $region5: #{tpu_custom_call.1} parent=0 // pred_fallthru
    _
  // Predicated region
  $region6: #{tpu_custom_call.1} parent=0 // pred_check
    _
  $region7: #{tpu_custom_call.1} parent=0 // pred_check_branch
    %11 = sbr.rel (0) target = $region9
  $region8: #{tpu_custom_call.1} parent=0 // pred_region
    _
  $region9: #{tpu_custom_call.1} parent=0 // pred_fallthru
    _
  // Predicated region
  $region10: #{tpu_custom_call.1} parent=0 // pred_check
    _
  $region11: #{tpu_custom_call.1} parent=0 // pred_check_branch
    %13 = sbr.rel (0) target = $region13
  $region12: #{tpu_custom_call.1} parent=0 // pred_region
    _
  $region13: #{tpu_custom_call.1} parent=0 // pred_fallthru
    _
  %v15 = vld [vmem:[%s0] sm:$0xf]
  %v16 = vld [vmem:[%s0 + $0x4] sm:$0xf]
  %v17 = vld [vmem:[%s0 + $0x8] sm:$0xf]
  %v18 = vld [vmem:[%s0 + $0xc] sm:$0xf]
  %v19 = vld [vmem:[%s0 + $0x10] sm:$0xf]
  %v20 = vld [vmem:[%s0 + $0x14] sm:$0xf]
  %v21 = vld [vmem:[%s0 + $0x18] sm:$0xf]
  %v22 = vld [vmem:[%s0 + $0x1c] sm:$0xf]
  %v23 = vld [vmem:[%s1] sm:$0xf]
  %v24 = vld [vmem:[%s1 + $0x4] sm:$0xf]
  %v25 = vld [vmem:[%s1 + $0x8] sm:$0xf]
  %v26 = vld [vmem:[%s1 + $0xc] sm:$0xf]
  %v27 = vld [vmem:[%s1 + $0x10] sm:$0xf]
  %v28 = vld [vmem:[%s1 + $0x14] sm:$0xf]
  %v29 = vld [vmem:[%s1 + $0x18] sm:$0xf]
  %v30 = vld [vmem:[%s1 + $0x1c] sm:$0xf]
  %v31 = vld [vmem:[%s2] sm:$0xf]
  %v32 = vld [vmem:[%s2 + $0x4] sm:$0xf]
  %v33 = vld [vmem:[%s2 + $0x8] sm:$0xf]
  %v42 = vunpack.c.l.b16 %v15
  %v43 = vunpack.c.l.b16 %v16
  %v44 = vunpack.c.l.b16 %v17
  %v45 = vunpack.c.l.b16 %v18
  %v46 = vunpack.c.l.b16 %v19
  %v47 = vunpack.c.l.b16 %v20
  %v48 = vunpack.c.l.b16 %v21
  %v49 = vunpack.c.l.b16 %v22
  %v50 = vpack.c.b16 %v43, %v42
  %v51 = vpack.c.b16 %v45, %v44
  %v52 = vpack.c.b16 %v47, %v46
  %v53 = vpack.c.b16 %v49, %v48
  %v57 = vunpack.c.l.b16 %v31
  %v58 = vunpack.c.l.b16 %v32
  %v59 = vunpack.c.l.b16 %v33
  %v60 = vpack.c.b16 %v58, %v57
  %v61 = vpack.c.b16 %v59, %v59
  %vm63 = vcmask 195584
  %v65 = vsel %vm63, %v50, 0
  %v68 = vsel %vm63, %v51, 0
  %v71 = vsel %vm63, %v52, 0
  %v74 = vsel %vm63, %v53, 0
  %vm76 = vcmask 1043456
  %v78 = vsel %vm76, %v61, 0
  %80 = vmatprep.subr.bf16.mxu0 0
  %81 = vmatpush1.bf16.msra.mxu0 %v60
  %82 = vmatprep.subr.bf16.mxu0 0
  %83 = vmatpush1.bf16.msra.mxu0 %v78
  %84 = vmatprep.subr.bf16.mxu0 0
  %85 = vmatpush1.bf16.msra.mxu0 0
  %86 = vmatprep.subr.bf16.mxu0 0
  %87 = vmatpush1.bf16.msra.mxu0 0
  %88 = vmatprep.subr.bf16.mxu0 0
  %89 = vmatpush1.bf16.msra.mxu0 0
  %90 = vmatprep.subr.bf16.mxu0 0
  %91 = vmatpush1.bf16.msra.mxu0 0
  %92 = vmatprep.subr.bf16.mxu0 0
  %93 = vmatpush1.bf16.msra.mxu0 0
  %94 = vmatprep.subr.bf16.mxu0 0
  %95 = vmatpush1.bf16.msra.mxu0 0
  %96 = vmatprep.subr.bf16.mxu0 0
  %97 = vmatpush1.bf16.msra.mxu0 0
  %98 = vmatprep.subr.bf16.mxu0 0
  %99 = vmatpush1.bf16.msra.mxu0 0
  %100 = vmatprep.subr.bf16.mxu0 0
  %101 = vmatpush1.bf16.msra.mxu0 0
  %102 = vmatprep.subr.bf16.mxu0 0
  %103 = vmatpush1.bf16.msra.mxu0 0
  %104 = vmatprep.subr.bf16.mxu0 0
  %105 = vmatpush1.bf16.msra.mxu0 0
  %106 = vmatprep.subr.bf16.mxu0 0
  %107 = vmatpush1.bf16.msra.mxu0 0
  %108 = vmatprep.subr.bf16.mxu0 0
  %109 = vmatpush1.bf16.msra.mxu0 0
  %110 = vmatprep.subr.bf16.mxu0 0
  %111 = vmatpush1.bf16.msra.mxu0 0
  %112 = vmatprep.mubr.bf16.mxu0 0
  %113 = vmatmul.mubr.bf16.gmra.mrb[0].mxu0 %v65
  %v114 = vpop.f32.mrb[0].mxu0
  %v115 = vadd.f32 0.0, %v114
  %v116 = vpop.f32.mrb[0].mxu0
  %v117 = vpop.f32.mrb[0].mxu0
  %v118 = vadd.f32 0.0, %v117
  %v119 = vpop.f32.mrb[0].mxu0
  %120 = vmatprep.mubr.bf16.mxu0 0
  %121 = vmatmul.mubr.bf16.gmra.mrb[0].mxu0 %v68
  %v122 = vpop.f32.mrb[0].mxu0
  %v123 = vadd.f32 0.0, %v122
  %v124 = vpop.f32.mrb[0].mxu0
  %v125 = vpop.f32.mrb[0].mxu0
  %v126 = vadd.f32 0.0, %v125
  %v127 = vpop.f32.mrb[0].mxu0
  %128 = vmatprep.mubr.bf16.mxu0 0
  %129 = vmatmul.mubr.bf16.gmra.mrb[0].mxu0 %v71
  %v130 = vpop.f32.mrb[0].mxu0
  %v131 = vadd.f32 0.0, %v130
  %v132 = vpop.f32.mrb[0].mxu0
  %v133 = vpop.f32.mrb[0].mxu0
  %v134 = vadd.f32 0.0, %v133
  %v135 = vpop.f32.mrb[0].mxu0
  %136 = vmatprep.mubr.bf16.mxu0 0
  %137 = vmatmul.mubr.bf16.gmra.mrb[0].mxu0 %v74
  %v138 = vpop.f32.mrb[0].mxu0
  %v139 = vadd.f32 0.0, %v138
  %v140 = vpop.f32.mrb[0].mxu0
  %v141 = vpop.f32.mrb[0].mxu0
  %v142 = vadd.f32 0.0, %v141
  %v143 = vpop.f32.mrb[0].mxu0
  %144 = vdwg.mxu0
  %v145 = vld [vmem:[%s2 + $0x10] sm:$0xf]
  %v146 = vld [vmem:[%s2 + $0x14] sm:$0xf]
  %v147 = vld [vmem:[%s2 + $0x18] sm:$0xf]
  %v151 = vunpack.c.l.b16 %v145
  %v152 = vunpack.c.l.b16 %v146
  %v153 = vunpack.c.l.b16 %v147
  %v154 = vpack.c.b16 %v152, %v151
  %v155 = vpack.c.b16 %v153, %v153
  %v158 = vsel %vm76, %v155, 0
  %160 = vmatprep.subr.bf16.mxu0 0
  %161 = vmatpush1.bf16.msra.mxu0 %v154
  %162 = vmatprep.subr.bf16.mxu0 0
  %163 = vmatpush1.bf16.msra.mxu0 %v158
  %164 = vmatprep.subr.bf16.mxu0 0
  %165 = vmatpush1.bf16.msra.mxu0 0
  %166 = vmatprep.subr.bf16.mxu0 0
  %167 = vmatpush1.bf16.msra.mxu0 0
  %168 = vmatprep.subr.bf16.mxu0 0
  %169 = vmatpush1.bf16.msra.mxu0 0
  %170 = vmatprep.subr.bf16.mxu0 0
  %171 = vmatpush1.bf16.msra.mxu0 0
  %172 = vmatprep.subr.bf16.mxu0 0
  %173 = vmatpush1.bf16.msra.mxu0 0
  %174 = vmatprep.subr.bf16.mxu0 0
  %175 = vmatpush1.bf16.msra.mxu0 0
  %176 = vmatprep.subr.bf16.mxu0 0
  %177 = vmatpush1.bf16.msra.mxu0 0
  %178 = vmatprep.subr.bf16.mxu0 0
  %179 = vmatpush1.bf16.msra.mxu0 0
  %180 = vmatprep.subr.bf16.mxu0 0
  %181 = vmatpush1.bf16.msra.mxu0 0
  %182 = vmatprep.subr.bf16.mxu0 0
  %183 = vmatpush1.bf16.msra.mxu0 0
  %184 = vmatprep.subr.bf16.mxu0 0
  %185 = vmatpush1.bf16.msra.mxu0 0
  %186 = vmatprep.subr.bf16.mxu0 0
  %187 = vmatpush1.bf16.msra.mxu0 0
  %188 = vmatprep.subr.bf16.mxu0 0
  %189 = vmatpush1.bf16.msra.mxu0 0
  %190 = vmatprep.subr.bf16.mxu0 0
  %191 = vmatpush1.bf16.msra.mxu0 0
  %192 = vmatprep.mubr.bf16.mxu0 0
  %193 = vmatmul.mubr.bf16.gmra.mrb[0].mxu0 %v65
  %v194 = vpop.f32.mrb[0].mxu0
  %v195 = vadd.f32 0.0, %v194
  %v196 = vpop.f32.mrb[0].mxu0
  %v197 = vpop.f32.mrb[0].mxu0
  %v198 = vadd.f32 0.0, %v197
  %v199 = vpop.f32.mrb[0].mxu0
  %200 = vmatprep.mubr.bf16.mxu0 0
  %201 = vmatmul.mubr.bf16.gmra.mrb[0].mxu0 %v68
  %v202 = vpop.f32.mrb[0].mxu0
  %v203 = vadd.f32 0.0, %v202
  %v204 = vpop.f32.mrb[0].mxu0
  %v205 = vpop.f32.mrb[0].mxu0
  %v206 = vadd.f32 0.0, %v205
  %v207 = vpop.f32.mrb[0].mxu0
  %208 = vmatprep.mubr.bf16.mxu0 0
  %209 = vmatmul.mubr.bf16.gmra.mrb[0].mxu0 %v71
  %v210 = vpop.f32.mrb[0].mxu0
  %v211 = vadd.f32 0.0, %v210
  %v212 = vpop.f32.mrb[0].mxu0
  %v213 = vpop.f32.mrb[0].mxu0
  %v214 = vadd.f32 0.0, %v213
  %v215 = vpop.f32.mrb[0].mxu0
  %216 = vmatprep.mubr.bf16.mxu0 0
  %217 = vmatmul.mubr.bf16.gmra.mrb[0].mxu0 %v74
  %v218 = vpop.f32.mrb[0].mxu0
  %v219 = vadd.f32 0.0, %v218
  %v220 = vpop.f32.mrb[0].mxu0
  %v221 = vpop.f32.mrb[0].mxu0
  %v222 = vadd.f32 0.0, %v221
  %v223 = vpop.f32.mrb[0].mxu0
  %224 = vdwg.mxu0
  %v225 = vpack.c.bf16 %v198, %v195
  %v226 = vpack.c.bf16 %v206, %v203
  %v227 = vpack.c.bf16 %v214, %v211
  %v228 = vpack.c.bf16 %v222, %v219
  %v229 = vld [vmem:[%s2 + $0x20] sm:$0x1]
  %v230 = vunpack.c.l.bf16 %v229
  %v231 = vlaneseq
  %v232 = vshrl.u32 %v231, 7
  %v233 = vsub.s32 0, %v232
  %v234 = vrot.slane %v230, %v233
  %v243 = vunpack.c.l.b16 %v23
  %v244 = vunpack.c.l.b16 %v24
  %v245 = vunpack.c.l.b16 %v25
  %v246 = vunpack.c.l.b16 %v26
  %v247 = vunpack.c.l.b16 %v27
  %v248 = vunpack.c.l.b16 %v28
  %v249 = vunpack.c.l.b16 %v29
  %v250 = vunpack.c.l.b16 %v30
  %v251 = vpack.c.b16 %v244, %v243
  %v252 = vpack.c.b16 %v246, %v245
  %v253 = vpack.c.b16 %v248, %v247
  %v254 = vpack.c.b16 %v250, %v249
  %vm255 = vcmask 523264
  %v257 = vsel %vm255, %v251, 0
  %v260 = vsel %vm255, %v252, 0
  %v263 = vsel %vm255, %v253, 0
  %v266 = vsel %vm255, %v254, 0
  %268 = vmatprep.subr.bf16.mxu0 0
  %269 = vmatpush1.bf16.msra.mxu0 %v225
  %270 = vmatprep.subr.bf16.mxu0 0
  %271 = vmatpush1.bf16.msra.mxu0 %v226
  %272 = vmatprep.subr.bf16.mxu0 0
  %273 = vmatpush1.bf16.msra.mxu0 %v227
  %274 = vmatprep.subr.bf16.mxu0 0
  %275 = vmatpush1.bf16.msra.mxu0 %v228
  %276 = vmatprep.subr.bf16.mxu0 0
  %277 = vmatpush1.bf16.msra.mxu0 0
  %278 = vmatprep.subr.bf16.mxu0 0
  %279 = vmatpush1.bf16.msra.mxu0 0
  %280 = vmatprep.subr.bf16.mxu0 0
  %281 = vmatpush1.bf16.msra.mxu0 0
  %282 = vmatprep.subr.bf16.mxu0 0
  %283 = vmatpush1.bf16.msra.mxu0 0
  %284 = vmatprep.subr.bf16.mxu0 0
  %285 = vmatpush1.bf16.msra.mxu0 0
  %286 = vmatprep.subr.bf16.mxu0 0
  %287 = vmatpush1.bf16.msra.mxu0 0
  %288 = vmatprep.subr.bf16.mxu0 0
  %289 = vmatpush1.bf16.msra.mxu0 0
  %290 = vmatprep.subr.bf16.mxu0 0
  %291 = vmatpush1.bf16.msra.mxu0 0
  %292 = vmatprep.subr.bf16.mxu0 0
  %293 = vmatpush1.bf16.msra.mxu0 0
  %294 = vmatprep.subr.bf16.mxu0 0
  %295 = vmatpush1.bf16.msra.mxu0 0
  %296 = vmatprep.subr.bf16.mxu0 0
  %297 = vmatpush1.bf16.msra.mxu0 0
  %298 = vmatprep.subr.bf16.mxu0 0
  %299 = vmatpush1.bf16.msra.mxu0 0
  %300 = vmatprep.mubr.bf16.mxu0 0
  %301 = vmatmul.mubr.bf16.gmra.mrb[0].mxu0 %v257
  %v302 = vpop.f32.mrb[0].mxu0
  %v303 = vadd.f32 %v234, %v302
  %v304 = vpop.f32.mrb[0].mxu0
  %v305 = vpop.f32.mrb[0].mxu0
  %v306 = vadd.f32 %v234, %v305
  %v307 = vpop.f32.mrb[0].mxu0
  %308 = vmatprep.mubr.bf16.mxu0 0
  %309 = vmatmul.mubr.bf16.gmra.mrb[0].mxu0 %v260
  %v310 = vpop.f32.mrb[0].mxu0
  %v311 = vadd.f32 %v234, %v310
  %v312 = vpop.f32.mrb[0].mxu0
  %v313 = vpop.f32.mrb[0].mxu0
  %v314 = vadd.f32 %v234, %v313
  %v315 = vpop.f32.mrb[0].mxu0
  %316 = vmatprep.mubr.bf16.mxu0 0
  %317 = vmatmul.mubr.bf16.gmra.mrb[0].mxu0 %v263
  %v318 = vpop.f32.mrb[0].mxu0
  %v319 = vadd.f32 %v234, %v318
  %v320 = vpop.f32.mrb[0].mxu0
  %v321 = vpop.f32.mrb[0].mxu0
  %v322 = vadd.f32 %v234, %v321
  %v323 = vpop.f32.mrb[0].mxu0
  %324 = vmatprep.mubr.bf16.mxu0 0
  %325 = vmatmul.mubr.bf16.gmra.mrb[0].mxu0 %v266
  %v326 = vpop.f32.mrb[0].mxu0
  %v327 = vadd.f32 %v234, %v326
  %v328 = vpop.f32.mrb[0].mxu0
  %v329 = vpop.f32.mrb[0].mxu0
  %v330 = vadd.f32 %v234, %v329
  %v331 = vpop.f32.mrb[0].mxu0
  %332 = vdwg.mxu0
  %v333 = vld [vmem:[%s2 + $0x48] sm:$0x1]
  %v334 = vunpack.c.l.bf16 %v333
  %v335 = vpack.c.bf16 %v306, %v303
  %v336 = vpack.c.bf16 %v314, %v311
  %v337 = vpack.c.bf16 %v322, %v319
  %v338 = vpack.c.bf16 %v330, %v327
  %v339 = vld [vmem:[%s2 + $0x28] sm:$0xf]
  %v340 = vld [vmem:[%s2 + $0x2c] sm:$0xf]
  %v341 = vld [vmem:[%s2 + $0x30] sm:$0xf]
  %v342 = vld [vmem:[%s2 + $0x34] sm:$0xf]
  %v347 = vunpack.c.l.b16 %v339
  %v348 = vunpack.c.l.b16 %v340
  %v349 = vunpack.c.l.b16 %v341
  %v350 = vunpack.c.l.b16 %v342
  %v351 = vpack.c.b16 %v348, %v347
  %v352 = vpack.c.b16 %v350, %v349
  %vm355 = vcmask 261120
  %v357 = vsel %vm355, %v335, 0
  %v360 = vsel %vm355, %v336, 0
  %v363 = vsel %vm355, %v337, 0
  %v366 = vsel %vm355, %v338, 0
  %368 = vmatprep.subr.bf16.mxu0 0
  %369 = vmatpush1.bf16.msra.mxu0 %v351
  %370 = vmatprep.subr.bf16.mxu0 0
  %371 = vmatpush1.bf16.msra.mxu0 %v352
  %372 = vmatprep.subr.bf16.mxu0 0
  %373 = vmatpush1.bf16.msra.mxu0 0
  %374 = vmatprep.subr.bf16.mxu0 0
  %375 = vmatpush1.bf16.msra.mxu0 0
  %376 = vmatprep.subr.bf16.mxu0 0
  %377 = vmatpush1.bf16.msra.mxu0 0
  %378 = vmatprep.subr.bf16.mxu0 0
  %379 = vmatpush1.bf16.msra.mxu0 0
  %380 = vmatprep.subr.bf16.mxu0 0
  %381 = vmatpush1.bf16.msra.mxu0 0
  %382 = vmatprep.subr.bf16.mxu0 0
  %383 = vmatpush1.bf16.msra.mxu0 0
  %384 = vmatprep.subr.bf16.mxu0 0
  %385 = vmatpush1.bf16.msra.mxu0 0
  %386 = vmatprep.subr.bf16.mxu0 0
  %387 = vmatpush1.bf16.msra.mxu0 0
  %388 = vmatprep.subr.bf16.mxu0 0
  %389 = vmatpush1.bf16.msra.mxu0 0
  %390 = vmatprep.subr.bf16.mxu0 0
  %391 = vmatpush1.bf16.msra.mxu0 0
  %392 = vmatprep.subr.bf16.mxu0 0
  %393 = vmatpush1.bf16.msra.mxu0 0
  %394 = vmatprep.subr.bf16.mxu0 0
  %395 = vmatpush1.bf16.msra.mxu0 0
  %396 = vmatprep.subr.bf16.mxu0 0
  %397 = vmatpush1.bf16.msra.mxu0 0
  %398 = vmatprep.subr.bf16.mxu0 0
  %399 = vmatpush1.bf16.msra.mxu0 0
  %400 = vmatprep.mubr.bf16.mxu0 0
  %401 = vmatmul.mubr.bf16.gmra.mrb[0].mxu0 %v357
  %v402 = vpop.f32.mrb[0].mxu0
  %v403 = vadd.f32 0.0, %v402
  %v404 = vpop.f32.mrb[0].mxu0
  %v405 = vpop.f32.mrb[0].mxu0
  %v406 = vadd.f32 0.0, %v405
  %v407 = vpop.f32.mrb[0].mxu0
  %408 = vmatprep.mubr.bf16.mxu0 0
  %409 = vmatmul.mubr.bf16.gmra.mrb[0].mxu0 %v360
  %v410 = vpop.f32.mrb[0].mxu0
  %v411 = vadd.f32 0.0, %v410
  %v412 = vpop.f32.mrb[0].mxu0
  %v413 = vpop.f32.mrb[0].mxu0
  %v414 = vadd.f32 0.0, %v413
  %v415 = vpop.f32.mrb[0].mxu0
  %416 = vmatprep.mubr.bf16.mxu0 0
  %417 = vmatmul.mubr.bf16.gmra.mrb[0].mxu0 %v363
  %v418 = vpop.f32.mrb[0].mxu0
  %v419 = vadd.f32 0.0, %v418
  %v420 = vpop.f32.mrb[0].mxu0
  %v421 = vpop.f32.mrb[0].mxu0
  %v422 = vadd.f32 0.0, %v421
  %v423 = vpop.f32.mrb[0].mxu0
  %424 = vmatprep.mubr.bf16.mxu0 0
  %425 = vmatmul.mubr.bf16.gmra.mrb[0].mxu0 %v366
  %v426 = vpop.f32.mrb[0].mxu0
  %v427 = vadd.f32 0.0, %v426
  %v428 = vpop.f32.mrb[0].mxu0
  %v429 = vpop.f32.mrb[0].mxu0
  %v430 = vadd.f32 0.0, %v429
  %v431 = vpop.f32.mrb[0].mxu0
  %432 = vdwg.mxu0
  %v433 = vlaneseq
  %v434 = vshrl.u32 %v433, 7
  %v435 = vsub.s32 0, %v434
  %v436 = vrot.slane %v334, %v435
  %v437 = vadd.f32 %v436, %v403
  %v438 = vadd.f32 %v436, %v406
  %v439 = vadd.f32 %v436, %v411
  %v440 = vadd.f32 %v436, %v414
  %v441 = vadd.f32 %v436, %v419
  %v442 = vadd.f32 %v436, %v422
  %v443 = vadd.f32 %v436, %v427
  %v444 = vadd.f32 %v436, %v430
  %v445 = vld [vmem:[%s2 + $0x38] sm:$0xf]
  %v446 = vld [vmem:[%s2 + $0x3c] sm:$0xf]
  %v447 = vld [vmem:[%s2 + $0x40] sm:$0xf]
  %v448 = vld [vmem:[%s2 + $0x44] sm:$0xf]
  %v449 = vld [vmem:[%s2 + $0x50] sm:$0x1]
  %v450 = vunpack.c.l.bf16 %v449
  %v451 = vpack.c.bf16 %v118, %v115
  %v452 = vpack.c.bf16 %v126, %v123
  %v453 = vpack.c.bf16 %v134, %v131
  %v454 = vpack.c.bf16 %v142, %v139
  %v459 = vunpack.c.l.b16 %v445
  %v460 = vunpack.c.l.b16 %v446
  %v461 = vunpack.c.l.b16 %v447
  %v462 = vunpack.c.l.b16 %v448
  %v463 = vpack.c.b16 %v460, %v459
  %v464 = vpack.c.b16 %v462, %v461
  %v468 = vsel %vm355, %v451, 0
  %v471 = vsel %vm355, %v452, 0
  %v474 = vsel %vm355, %v453, 0
  %v477 = vsel %vm355, %v454, 0
  %479 = vmatprep.subr.bf16.mxu0 0
  %480 = vmatpush1.bf16.msra.mxu0 %v463
  %481 = vmatprep.subr.bf16.mxu0 0
  %482 = vmatpush1.bf16.msra.mxu0 %v464
  %483 = vmatprep.subr.bf16.mxu0 0
  %484 = vmatpush1.bf16.msra.mxu0 0
  %485 = vmatprep.subr.bf16.mxu0 0
  %486 = vmatpush1.bf16.msra.mxu0 0
  %487 = vmatprep.subr.bf16.mxu0 0
  %488 = vmatpush1.bf16.msra.mxu0 0
  %489 = vmatprep.subr.bf16.mxu0 0
  %490 = vmatpush1.bf16.msra.mxu0 0
  %491 = vmatprep.subr.bf16.mxu0 0
  %492 = vmatpush1.bf16.msra.mxu0 0
  %493 = vmatprep.subr.bf16.mxu0 0
  %494 = vmatpush1.bf16.msra.mxu0 0
  %495 = vmatprep.subr.bf16.mxu0 0
  %496 = vmatpush1.bf16.msra.mxu0 0
  %497 = vmatprep.subr.bf16.mxu0 0
  %498 = vmatpush1.bf16.msra.mxu0 0
  %499 = vmatprep.subr.bf16.mxu0 0
  %500 = vmatpush1.bf16.msra.mxu0 0
  %501 = vmatprep.subr.bf16.mxu0 0
  %502 = vmatpush1.bf16.msra.mxu0 0
  %503 = vmatprep.subr.bf16.mxu0 0
  %504 = vmatpush1.bf16.msra.mxu0 0
  %505 = vmatprep.subr.bf16.mxu0 0
  %506 = vmatpush1.bf16.msra.mxu0 0
  %507 = vmatprep.subr.bf16.mxu0 0
  %508 = vmatpush1.bf16.msra.mxu0 0
  %509 = vmatprep.subr.bf16.mxu0 0
  %510 = vmatpush1.bf16.msra.mxu0 0
  %511 = vmatprep.mubr.bf16.mxu0 0
  %512 = vmatmul.mubr.bf16.gmra.mrb[0].mxu0 %v468
  %v513 = vpop.f32.mrb[0].mxu0
  %v514 = vadd.f32 0.0, %v513
  %v515 = vpop.f32.mrb[0].mxu0
  %v516 = vpop.f32.mrb[0].mxu0
  %v517 = vadd.f32 0.0, %v516
  %v518 = vpop.f32.mrb[0].mxu0
  %519 = vmatprep.mubr.bf16.mxu0 0
  %520 = vmatmul.mubr.bf16.gmra.mrb[0].mxu0 %v471
  %v521 = vpop.f32.mrb[0].mxu0
  %v522 = vadd.f32 0.0, %v521
  %v523 = vpop.f32.mrb[0].mxu0
  %v524 = vpop.f32.mrb[0].mxu0
  %v525 = vadd.f32 0.0, %v524
  %v526 = vpop.f32.mrb[0].mxu0
  %527 = vmatprep.mubr.bf16.mxu0 0
  %528 = vmatmul.mubr.bf16.gmra.mrb[0].mxu0 %v474
  %v529 = vpop.f32.mrb[0].mxu0
  %v530 = vadd.f32 0.0, %v529
  %v531 = vpop.f32.mrb[0].mxu0
  %v532 = vpop.f32.mrb[0].mxu0
  %v533 = vadd.f32 0.0, %v532
  %v534 = vpop.f32.mrb[0].mxu0
  %535 = vmatprep.mubr.bf16.mxu0 0
  %536 = vmatmul.mubr.bf16.gmra.mrb[0].mxu0 %v477
  %v537 = vpop.f32.mrb[0].mxu0
  %v538 = vadd.f32 0.0, %v537
  %v539 = vpop.f32.mrb[0].mxu0
  %v540 = vpop.f32.mrb[0].mxu0
  %v541 = vadd.f32 0.0, %v540
  %v542 = vpop.f32.mrb[0].mxu0
  %543 = vdwg.mxu0
  %v544 = vadd.f32 %v437, %v514
  %v545 = vadd.f32 %v438, %v517
  %v546 = vadd.f32 %v439, %v522
  %v547 = vadd.f32 %v440, %v525
  %v548 = vadd.f32 %v441, %v530
  %v549 = vadd.f32 %v442, %v533
  %v550 = vadd.f32 %v443, %v538
  %v551 = vadd.f32 %v444, %v541
  %v552 = vxor.u32 %v544, 2147483648
  %v553 = vxor.u32 %v545, 2147483648
  %v554 = vxor.u32 %v546, 2147483648
  %v555 = vxor.u32 %v547, 2147483648
  %v556 = vxor.u32 %v548, 2147483648
  %v557 = vxor.u32 %v549, 2147483648
  %v558 = vxor.u32 %v550, 2147483648
  %v559 = vxor.u32 %v551, 2147483648
  %v560 = vmul.f32 %v552, 1.442695
  %v561 = vpow.pop %v560
  %v562 = vmul.f32 %v553, 1.442695
  %v563 = vpow.pop %v562
  %v564 = vmul.f32 %v554, 1.442695
  %v565 = vpow.pop %v564
  %v566 = vmul.f32 %v555, 1.442695
  %v567 = vpow.pop %v566
  %v568 = vmul.f32 %v556, 1.442695
  %v569 = vpow.pop %v568
  %v570 = vmul.f32 %v557, 1.442695
  %v571 = vpow.pop %v570
  %v572 = vmul.f32 %v558, 1.442695
  %v573 = vpow.pop %v572
  %v574 = vmul.f32 %v559, 1.442695
  %v575 = vpow.pop %v574
  %v576 = vadd.f32 %v561, 1.0
  %v577 = vadd.f32 %v563, 1.0
  %v578 = vadd.f32 %v565, 1.0
  %v579 = vadd.f32 %v567, 1.0
  %v580 = vadd.f32 %v569, 1.0
  %v581 = vadd.f32 %v571, 1.0
  %v582 = vadd.f32 %v573, 1.0
  %v583 = vadd.f32 %v575, 1.0
  %v584 = vrcp.pop %v576
  %v585 = vmul.f32 1.0, %v584
  %v586 = vrcp.pop %v577
  %v587 = vmul.f32 1.0, %v586
  %v588 = vrcp.pop %v578
  %v589 = vmul.f32 1.0, %v588
  %v590 = vrcp.pop %v579
  %v591 = vmul.f32 1.0, %v590
  %v592 = vrcp.pop %v580
  %v593 = vmul.f32 1.0, %v592
  %v594 = vrcp.pop %v581
  %v595 = vmul.f32 1.0, %v594
  %v596 = vrcp.pop %v582
  %v597 = vmul.f32 1.0, %v596
  %v598 = vrcp.pop %v583
  %v599 = vmul.f32 1.0, %v598
  %v600 = vlaneseq
  %v601 = vshrl.u32 %v600, 7
  %v602 = vsub.s32 0, %v601
  %v603 = vrot.slane %v450, %v602
  %605 = vrot.lane.b32.xlu0 %v603, 64
  %v606 = vpop.permute.xlu0 %605
  %v608 = vadd.f32 %v514, %v606
  %v609 = vadd.f32 %v517, %v606
  %v610 = vadd.f32 %v522, %v606
  %v611 = vadd.f32 %v525, %v606
  %v612 = vadd.f32 %v530, %v606
  %v613 = vadd.f32 %v533, %v606
  %v614 = vadd.f32 %v538, %v606
  %v615 = vadd.f32 %v541, %v606
  %624 = vrot.lane.b32.xlu0 %v608, 64
  %v625 = vpop.permute.xlu0 %624
  %626 = vrot.lane.b32.xlu0 %v609, 64
  %v627 = vpop.permute.xlu0 %626
  %628 = vrot.lane.b32.xlu0 %v610, 64
  %v629 = vpop.permute.xlu0 %628
  %630 = vrot.lane.b32.xlu0 %v611, 64
  %v631 = vpop.permute.xlu0 %630
  %632 = vrot.lane.b32.xlu0 %v612, 64
  %v633 = vpop.permute.xlu0 %632
  %634 = vrot.lane.b32.xlu0 %v613, 64
  %v635 = vpop.permute.xlu0 %634
  %636 = vrot.lane.b32.xlu0 %v614, 64
  %v637 = vpop.permute.xlu0 %636
  %638 = vrot.lane.b32.xlu0 %v615, 64
  %v639 = vpop.permute.xlu0 %638
  %v648 = vmul.f32 %v585, %v625
  %v649 = vmul.f32 %v587, %v627
  %v650 = vmul.f32 %v589, %v629
  %v651 = vmul.f32 %v591, %v631
  %v652 = vmul.f32 %v593, %v633
  %v653 = vmul.f32 %v595, %v635
  %v654 = vmul.f32 %v597, %v637
  %v655 = vmul.f32 %v599, %v639
  %664 = vrot.lane.b32.xlu0 %v648, 64
  %v665 = vpop.permute.xlu0 %664
  %666 = vrot.lane.b32.xlu0 %v649, 64
  %v667 = vpop.permute.xlu0 %666
  %668 = vrot.lane.b32.xlu0 %v650, 64
  %v669 = vpop.permute.xlu0 %668
  %670 = vrot.lane.b32.xlu0 %v651, 64
  %v671 = vpop.permute.xlu0 %670
  %672 = vrot.lane.b32.xlu0 %v652, 64
  %v673 = vpop.permute.xlu0 %672
  %674 = vrot.lane.b32.xlu0 %v653, 64
  %v675 = vpop.permute.xlu0 %674
  %676 = vrot.lane.b32.xlu0 %v654, 64
  %v677 = vpop.permute.xlu0 %676
  %678 = vrot.lane.b32.xlu0 %v655, 64
  %v679 = vpop.permute.xlu0 %678
  %v688 = vadd.f32 %v437, %v665
  %v689 = vadd.f32 %v438, %v667
  %v690 = vadd.f32 %v439, %v669
  %v691 = vadd.f32 %v440, %v671
  %v692 = vadd.f32 %v441, %v673
  %v693 = vadd.f32 %v442, %v675
  %v694 = vadd.f32 %v443, %v677
  %v695 = vadd.f32 %v444, %v679
  %v696 = vtanh.pop %v688
  %v697 = vtanh.pop %v689
  %v698 = vtanh.pop %v690
  %v699 = vtanh.pop %v691
  %v700 = vtanh.pop %v692
  %v701 = vtanh.pop %v693
  %v702 = vtanh.pop %v694
  %v703 = vtanh.pop %v695
  %712 = vrot.lane.b32.xlu0 %v696, 64
  %v713 = vpop.permute.xlu0 %712
  %714 = vrot.lane.b32.xlu0 %v697, 64
  %v715 = vpop.permute.xlu0 %714
  %716 = vrot.lane.b32.xlu0 %v698, 64
  %v717 = vpop.permute.xlu0 %716
  %718 = vrot.lane.b32.xlu0 %v699, 64
  %v719 = vpop.permute.xlu0 %718
  %720 = vrot.lane.b32.xlu0 %v700, 64
  %v721 = vpop.permute.xlu0 %720
  %722 = vrot.lane.b32.xlu0 %v701, 64
  %v723 = vpop.permute.xlu0 %722
  %724 = vrot.lane.b32.xlu0 %v702, 64
  %v725 = vpop.permute.xlu0 %724
  %726 = vrot.lane.b32.xlu0 %v703, 64
  %v727 = vpop.permute.xlu0 %726
  %v736 = vsub.f32 %v115, %v713
  %v737 = vsub.f32 %v118, %v715
  %v738 = vsub.f32 %v123, %v717
  %v739 = vsub.f32 %v126, %v719
  %v740 = vsub.f32 %v131, %v721
  %v741 = vsub.f32 %v134, %v723
  %v742 = vsub.f32 %v139, %v725
  %v743 = vsub.f32 %v142, %v727
  %752 = vrot.lane.b32.xlu0 %v736, 32
  %v753 = vpop.permute.xlu0 %752
  %754 = vrot.lane.b32.xlu0 %v737, 32
  %v755 = vpop.permute.xlu0 %754
  %756 = vrot.lane.b32.xlu0 %v738, 32
  %v757 = vpop.permute.xlu0 %756
  %758 = vrot.lane.b32.xlu0 %v739, 32
  %v759 = vpop.permute.xlu0 %758
  %760 = vrot.lane.b32.xlu0 %v740, 32
  %v761 = vpop.permute.xlu0 %760
  %762 = vrot.lane.b32.xlu0 %v741, 32
  %v763 = vpop.permute.xlu0 %762
  %764 = vrot.lane.b32.xlu0 %v742, 32
  %v765 = vpop.permute.xlu0 %764
  %766 = vrot.lane.b32.xlu0 %v743, 32
  %v767 = vpop.permute.xlu0 %766
  %v776 = vmul.f32 %v585, %v753
  %v777 = vmul.f32 %v587, %v755
  %v778 = vmul.f32 %v589, %v757
  %v779 = vmul.f32 %v591, %v759
  %v780 = vmul.f32 %v593, %v761
  %v781 = vmul.f32 %v595, %v763
  %v782 = vmul.f32 %v597, %v765
  %v783 = vmul.f32 %v599, %v767
  %792 = vrot.lane.b32.xlu0 %v776, 32
  %v793 = vpop.permute.xlu0 %792
  %794 = vrot.lane.b32.xlu0 %v777, 32
  %v795 = vpop.permute.xlu0 %794
  %796 = vrot.lane.b32.xlu0 %v778, 32
  %v797 = vpop.permute.xlu0 %796
  %798 = vrot.lane.b32.xlu0 %v779, 32
  %v799 = vpop.permute.xlu0 %798
  %800 = vrot.lane.b32.xlu0 %v780, 32
  %v801 = vpop.permute.xlu0 %800
  %802 = vrot.lane.b32.xlu0 %v781, 32
  %v803 = vpop.permute.xlu0 %802
  %804 = vrot.lane.b32.xlu0 %v782, 32
  %v805 = vpop.permute.xlu0 %804
  %806 = vrot.lane.b32.xlu0 %v783, 32
  %v807 = vpop.permute.xlu0 %806
  %v816 = vadd.f32 %v696, %v793
  %v817 = vadd.f32 %v697, %v795
  %v818 = vadd.f32 %v698, %v797
  %v819 = vadd.f32 %v699, %v799
  %v820 = vadd.f32 %v700, %v801
  %v821 = vadd.f32 %v701, %v803
  %v822 = vadd.f32 %v702, %v805
  %v823 = vadd.f32 %v703, %v807
  %v824 = vpack.c.bf16 %v817, %v816
  %v825 = vpack.c.bf16 %v819, %v818
  %v826 = vpack.c.bf16 %v821, %v820
  %v827 = vpack.c.bf16 %v823, %v822
  %832 = vrot.lane.b32.xlu0 %v824, 64
  %v833 = vpop.permute.xlu0 %832
  %834 = vrot.lane.b32.xlu0 %v825, 64
  %v835 = vpop.permute.xlu0 %834
  %836 = vrot.lane.b32.xlu0 %v826, 64
  %v837 = vpop.permute.xlu0 %836
  %838 = vrot.lane.b32.xlu0 %v827, 64
  %v839 = vpop.permute.xlu0 %838
  %v841 = vsel %vm355, %v833, 0
  %v844 = vsel %vm355, %v835, 0
  %v847 = vsel %vm355, %v837, 0
  %v850 = vsel %vm355, %v839, 0
  %852 = vmatprep.subr.bf16.mxu0 0
  %853 = vmatpush1.bf16.msra.mxu0 %v463
  %854 = vmatprep.subr.bf16.mxu0 0
  %855 = vmatpush1.bf16.msra.mxu0 %v464
  %856 = vmatprep.subr.bf16.mxu0 0
  %857 = vmatpush1.bf16.msra.mxu0 0
  %858 = vmatprep.subr.bf16.mxu0 0
  %859 = vmatpush1.bf16.msra.mxu0 0
  %860 = vmatprep.subr.bf16.mxu0 0
  %861 = vmatpush1.bf16.msra.mxu0 0
  %862 = vmatprep.subr.bf16.mxu0 0
  %863 = vmatpush1.bf16.msra.mxu0 0
  %864 = vmatprep.subr.bf16.mxu0 0
  %865 = vmatpush1.bf16.msra.mxu0 0
  %866 = vmatprep.subr.bf16.mxu0 0
  %867 = vmatpush1.bf16.msra.mxu0 0
  %868 = vmatprep.subr.bf16.mxu0 0
  %869 = vmatpush1.bf16.msra.mxu0 0
  %870 = vmatprep.subr.bf16.mxu0 0
  %871 = vmatpush1.bf16.msra.mxu0 0
  %872 = vmatprep.subr.bf16.mxu0 0
  %873 = vmatpush1.bf16.msra.mxu0 0
  %874 = vmatprep.subr.bf16.mxu0 0
  %875 = vmatpush1.bf16.msra.mxu0 0
  %876 = vmatprep.subr.bf16.mxu0 0
  %877 = vmatpush1.bf16.msra.mxu0 0
  %878 = vmatprep.subr.bf16.mxu0 0
  %879 = vmatpush1.bf16.msra.mxu0 0
  %880 = vmatprep.subr.bf16.mxu0 0
  %881 = vmatpush1.bf16.msra.mxu0 0
  %882 = vmatprep.subr.bf16.mxu0 0
  %883 = vmatpush1.bf16.msra.mxu0 0
  %884 = vmatprep.mubr.bf16.mxu0 0
  %885 = vmatmul.mubr.bf16.gmra.mrb[0].mxu0 %v841
  %v886 = vpop.f32.mrb[0].mxu0
  %v887 = vadd.f32 0.0, %v886
  %v888 = vpop.f32.mrb[0].mxu0
  %v889 = vpop.f32.mrb[0].mxu0
  %v890 = vadd.f32 0.0, %v889
  %v891 = vpop.f32.mrb[0].mxu0
  %892 = vmatprep.mubr.bf16.mxu0 0
  %893 = vmatmul.mubr.bf16.gmra.mrb[0].mxu0 %v844
  %v894 = vpop.f32.mrb[0].mxu0
  %v895 = vadd.f32 0.0, %v894
  %v896 = vpop.f32.mrb[0].mxu0
  %v897 = vpop.f32.mrb[0].mxu0
  %v898 = vadd.f32 0.0, %v897
  %v899 = vpop.f32.mrb[0].mxu0
  %900 = vmatprep.mubr.bf16.mxu0 0
  %901 = vmatmul.mubr.bf16.gmra.mrb[0].mxu0 %v847
  %v902 = vpop.f32.mrb[0].mxu0
  %v903 = vadd.f32 0.0, %v902
  %v904 = vpop.f32.mrb[0].mxu0
  %v905 = vpop.f32.mrb[0].mxu0
  %v906 = vadd.f32 0.0, %v905
  %v907 = vpop.f32.mrb[0].mxu0
  %908 = vmatprep.mubr.bf16.mxu0 0
  %909 = vmatmul.mubr.bf16.gmra.mrb[0].mxu0 %v850
  %v910 = vpop.f32.mrb[0].mxu0
  %v911 = vadd.f32 0.0, %v910
  %v912 = vpop.f32.mrb[0].mxu0
  %v913 = vpop.f32.mrb[0].mxu0
  %v914 = vadd.f32 0.0, %v913
  %v915 = vpop.f32.mrb[0].mxu0
  %916 = vdwg.mxu0
  %v917 = vadd.f32 %v437, %v887
  %v918 = vadd.f32 %v438, %v890
  %v919 = vadd.f32 %v439, %v895
  %v920 = vadd.f32 %v440, %v898
  %v921 = vadd.f32 %v441, %v903
  %v922 = vadd.f32 %v442, %v906
  %v923 = vadd.f32 %v443, %v911
  %v924 = vadd.f32 %v444, %v914
  %v925 = vxor.u32 %v917, 2147483648
  %v926 = vxor.u32 %v918, 2147483648
  %v927 = vxor.u32 %v919, 2147483648
  %v928 = vxor.u32 %v920, 2147483648
  %v929 = vxor.u32 %v921, 2147483648
  %v930 = vxor.u32 %v922, 2147483648
  %v931 = vxor.u32 %v923, 2147483648
  %v932 = vxor.u32 %v924, 2147483648
  %v933 = vmul.f32 %v925, 1.442695
  %v934 = vpow.pop %v933
  %v935 = vmul.f32 %v926, 1.442695
  %v936 = vpow.pop %v935
  %v937 = vmul.f32 %v927, 1.442695
  %v938 = vpow.pop %v937
  %v939 = vmul.f32 %v928, 1.442695
  %v940 = vpow.pop %v939
  %v941 = vmul.f32 %v929, 1.442695
  %v942 = vpow.pop %v941
  %v943 = vmul.f32 %v930, 1.442695
  %v944 = vpow.pop %v943
  %v945 = vmul.f32 %v931, 1.442695
  %v946 = vpow.pop %v945
  %v947 = vmul.f32 %v932, 1.442695
  %v948 = vpow.pop %v947
  %v949 = vadd.f32 %v934, 1.0
  %v950 = vadd.f32 %v936, 1.0
  %v951 = vadd.f32 %v938, 1.0
  %v952 = vadd.f32 %v940, 1.0
  %v953 = vadd.f32 %v942, 1.0
  %v954 = vadd.f32 %v944, 1.0
  %v955 = vadd.f32 %v946, 1.0
  %v956 = vadd.f32 %v948, 1.0
  %v957 = vrcp.pop %v949
  %v958 = vmul.f32 1.0, %v957
  %v959 = vrcp.pop %v950
  %v960 = vmul.f32 1.0, %v959
  %v961 = vrcp.pop %v951
  %v962 = vmul.f32 1.0, %v961
  %v963 = vrcp.pop %v952
  %v964 = vmul.f32 1.0, %v963
  %v965 = vrcp.pop %v953
  %v966 = vmul.f32 1.0, %v965
  %v967 = vrcp.pop %v954
  %v968 = vmul.f32 1.0, %v967
  %v969 = vrcp.pop %v955
  %v970 = vmul.f32 1.0, %v969
  %v971 = vrcp.pop %v956
  %v972 = vmul.f32 1.0, %v971
  %v973 = vadd.f32 %v887, %v606
  %v974 = vadd.f32 %v890, %v606
  %v975 = vadd.f32 %v895, %v606
  %v976 = vadd.f32 %v898, %v606
  %v977 = vadd.f32 %v903, %v606
  %v978 = vadd.f32 %v906, %v606
  %v979 = vadd.f32 %v911, %v606
  %v980 = vadd.f32 %v914, %v606
  %989 = vrot.lane.b32.xlu0 %v973, 64
  %v990 = vpop.permute.xlu0 %989
  %991 = vrot.lane.b32.xlu0 %v974, 64
  %v992 = vpop.permute.xlu0 %991
  %993 = vrot.lane.b32.xlu0 %v975, 64
  %v994 = vpop.permute.xlu0 %993
  %995 = vrot.lane.b32.xlu0 %v976, 64
  %v996 = vpop.permute.xlu0 %995
  %997 = vrot.lane.b32.xlu0 %v977, 64
  %v998 = vpop.permute.xlu0 %997
  %999 = vrot.lane.b32.xlu0 %v978, 64
  %v1000 = vpop.permute.xlu0 %999
  %1001 = vrot.lane.b32.xlu0 %v979, 64
  %v1002 = vpop.permute.xlu0 %1001
  %1003 = vrot.lane.b32.xlu0 %v980, 64
  %v1004 = vpop.permute.xlu0 %1003
  %v1013 = vmul.f32 %v958, %v990
  %v1014 = vmul.f32 %v960, %v992
  %v1015 = vmul.f32 %v962, %v994
  %v1016 = vmul.f32 %v964, %v996
  %v1017 = vmul.f32 %v966, %v998
  %v1018 = vmul.f32 %v968, %v1000
  %v1019 = vmul.f32 %v970, %v1002
  %v1020 = vmul.f32 %v972, %v1004
  %1029 = vrot.lane.b32.xlu0 %v1013, 64
  %v1030 = vpop.permute.xlu0 %1029
  %1031 = vrot.lane.b32.xlu0 %v1014, 64
  %v1032 = vpop.permute.xlu0 %1031
  %1033 = vrot.lane.b32.xlu0 %v1015, 64
  %v1034 = vpop.permute.xlu0 %1033
  %1035 = vrot.lane.b32.xlu0 %v1016, 64
  %v1036 = vpop.permute.xlu0 %1035
  %1037 = vrot.lane.b32.xlu0 %v1017, 64
  %v1038 = vpop.permute.xlu0 %1037
  %1039 = vrot.lane.b32.xlu0 %v1018, 64
  %v1040 = vpop.permute.xlu0 %1039
  %1041 = vrot.lane.b32.xlu0 %v1019, 64
  %v1042 = vpop.permute.xlu0 %1041
  %1043 = vrot.lane.b32.xlu0 %v1020, 64
  %v1044 = vpop.permute.xlu0 %1043
  %v1053 = vadd.f32 %v437, %v1030
  %v1054 = vadd.f32 %v438, %v1032
  %v1055 = vadd.f32 %v439, %v1034
  %v1056 = vadd.f32 %v440, %v1036
  %v1057 = vadd.f32 %v441, %v1038
  %v1058 = vadd.f32 %v442, %v1040
  %v1059 = vadd.f32 %v443, %v1042
  %v1060 = vadd.f32 %v444, %v1044
  %v1061 = vtanh.pop %v1053
  %v1062 = vtanh.pop %v1054
  %v1063 = vtanh.pop %v1055
  %v1064 = vtanh.pop %v1056
  %v1065 = vtanh.pop %v1057
  %v1066 = vtanh.pop %v1058
  %v1067 = vtanh.pop %v1059
  %v1068 = vtanh.pop %v1060
  %v1069 = vsub.f32 %v816, %v1061
  %v1070 = vsub.f32 %v817, %v1062
  %v1071 = vsub.f32 %v818, %v1063
  %v1072 = vsub.f32 %v819, %v1064
  %v1073 = vsub.f32 %v820, %v1065
  %v1074 = vsub.f32 %v821, %v1066
  %v1075 = vsub.f32 %v822, %v1067
  %v1076 = vsub.f32 %v823, %v1068
  %1085 = vrot.lane.b32.xlu0 %v1069, 96
  %v1086 = vpop.permute.xlu0 %1085
  %1087 = vrot.lane.b32.xlu0 %v1070, 96
  %v1088 = vpop.permute.xlu0 %1087
  %1089 = vrot.lane.b32.xlu0 %v1071, 96
  %v1090 = vpop.permute.xlu0 %1089
  %1091 = vrot.lane.b32.xlu0 %v1072, 96
  %v1092 = vpop.permute.xlu0 %1091
  %1093 = vrot.lane.b32.xlu0 %v1073, 96
  %v1094 = vpop.permute.xlu0 %1093
  %1095 = vrot.lane.b32.xlu0 %v1074, 96
  %v1096 = vpop.permute.xlu0 %1095
  %1097 = vrot.lane.b32.xlu0 %v1075, 96
  %v1098 = vpop.permute.xlu0 %1097
  %1099 = vrot.lane.b32.xlu0 %v1076, 96
  %v1100 = vpop.permute.xlu0 %1099
  %v1109 = vmul.f32 %v958, %v1086
  %v1110 = vmul.f32 %v960, %v1088
  %v1111 = vmul.f32 %v962, %v1090
  %v1112 = vmul.f32 %v964, %v1092
  %v1113 = vmul.f32 %v966, %v1094
  %v1114 = vmul.f32 %v968, %v1096
  %v1115 = vmul.f32 %v970, %v1098
  %v1116 = vmul.f32 %v972, %v1100
  %1125 = vrot.lane.b32.xlu0 %v1109, 32
  %v1126 = vpop.permute.xlu0 %1125
  %1127 = vrot.lane.b32.xlu0 %v1110, 32
  %v1128 = vpop.permute.xlu0 %1127
  %1129 = vrot.lane.b32.xlu0 %v1111, 32
  %v1130 = vpop.permute.xlu0 %1129
  %1131 = vrot.lane.b32.xlu0 %v1112, 32
  %v1132 = vpop.permute.xlu0 %1131
  %1133 = vrot.lane.b32.xlu0 %v1113, 32
  %v1134 = vpop.permute.xlu0 %1133
  %1135 = vrot.lane.b32.xlu0 %v1114, 32
  %v1136 = vpop.permute.xlu0 %1135
  %1137 = vrot.lane.b32.xlu0 %v1115, 32
  %v1138 = vpop.permute.xlu0 %1137
  %1139 = vrot.lane.b32.xlu0 %v1116, 32
  %v1140 = vpop.permute.xlu0 %1139
  %v1149 = vadd.f32 %v1061, %v1126
  %v1150 = vadd.f32 %v1062, %v1128
  %v1151 = vadd.f32 %v1063, %v1130
  %v1152 = vadd.f32 %v1064, %v1132
  %v1153 = vadd.f32 %v1065, %v1134
  %v1154 = vadd.f32 %v1066, %v1136
  %v1155 = vadd.f32 %v1067, %v1138
  %v1156 = vadd.f32 %v1068, %v1140
  %v1157 = vld [vmem:[%s2 + $0x88] sm:$0x1]
  %v1158 = vunpack.c.l.bf16 %v1157
  %v1159 = vld [vmem:[%s2 + $0x58] sm:$0xf]
  %v1160 = vld [vmem:[%s2 + $0x5c] sm:$0xf]
  %v1161 = vld [vmem:[%s2 + $0x60] sm:$0xf]
  %v1162 = vld [vmem:[%s2 + $0x64] sm:$0xf]
  %v1167 = vunpack.c.l.b16 %v1159
  %v1168 = vunpack.c.l.b16 %v1160
  %v1169 = vunpack.c.l.b16 %v1161
  %v1170 = vunpack.c.l.b16 %v1162
  %v1171 = vpack.c.b16 %v1168, %v1167
  %v1172 = vpack.c.b16 %v1170, %v1169
  %1175 = vmatprep.subr.bf16.mxu0 0
  %1176 = vmatpush1.bf16.msra.mxu0 %v1171
  %1177 = vmatprep.subr.bf16.mxu0 0
  %1178 = vmatpush1.bf16.msra.mxu0 %v1172
  %1179 = vmatprep.subr.bf16.mxu0 0
  %1180 = vmatpush1.bf16.msra.mxu0 0
  %1181 = vmatprep.subr.bf16.mxu0 0
  %1182 = vmatpush1.bf16.msra.mxu0 0
  %1183 = vmatprep.subr.bf16.mxu0 0
  %1184 = vmatpush1.bf16.msra.mxu0 0
  %1185 = vmatprep.subr.bf16.mxu0 0
  %1186 = vmatpush1.bf16.msra.mxu0 0
  %1187 = vmatprep.subr.bf16.mxu0 0
  %1188 = vmatpush1.bf16.msra.mxu0 0
  %1189 = vmatprep.subr.bf16.mxu0 0
  %1190 = vmatpush1.bf16.msra.mxu0 0
  %1191 = vmatprep.subr.bf16.mxu0 0
  %1192 = vmatpush1.bf16.msra.mxu0 0
  %1193 = vmatprep.subr.bf16.mxu0 0
  %1194 = vmatpush1.bf16.msra.mxu0 0
  %1195 = vmatprep.subr.bf16.mxu0 0
  %1196 = vmatpush1.bf16.msra.mxu0 0
  %1197 = vmatprep.subr.bf16.mxu0 0
  %1198 = vmatpush1.bf16.msra.mxu0 0
  %1199 = vmatprep.subr.bf16.mxu0 0
  %1200 = vmatpush1.bf16.msra.mxu0 0
  %1201 = vmatprep.subr.bf16.mxu0 0
  %1202 = vmatpush1.bf16.msra.mxu0 0
  %1203 = vmatprep.subr.bf16.mxu0 0
  %1204 = vmatpush1.bf16.msra.mxu0 0
  %1205 = vmatprep.subr.bf16.mxu0 0
  %1206 = vmatpush1.bf16.msra.mxu0 0
  %1207 = vmatprep.mubr.bf16.mxu0 0
  %1208 = vmatmul.mubr.bf16.gmra.mrb[0].mxu0 %v468
  %v1209 = vpop.f32.mrb[0].mxu0
  %v1210 = vadd.f32 0.0, %v1209
  %v1211 = vpop.f32.mrb[0].mxu0
  %v1212 = vpop.f32.mrb[0].mxu0
  %v1213 = vadd.f32 0.0, %v1212
  %v1214 = vpop.f32.mrb[0].mxu0
  %1215 = vmatprep.mubr.bf16.mxu0 0
  %1216 = vmatmul.mubr.bf16.gmra.mrb[0].mxu0 %v471
  %v1217 = vpop.f32.mrb[0].mxu0
  %v1218 = vadd.f32 0.0, %v1217
  %v1219 = vpop.f32.mrb[0].mxu0
  %v1220 = vpop.f32.mrb[0].mxu0
  %v1221 = vadd.f32 0.0, %v1220
  %v1222 = vpop.f32.mrb[0].mxu0
  %1223 = vmatprep.mubr.bf16.mxu0 0
  %1224 = vmatmul.mubr.bf16.gmra.mrb[0].mxu0 %v474
  %v1225 = vpop.f32.mrb[0].mxu0
  %v1226 = vadd.f32 0.0, %v1225
  %v1227 = vpop.f32.mrb[0].mxu0
  %v1228 = vpop.f32.mrb[0].mxu0
  %v1229 = vadd.f32 0.0, %v1228
  %v1230 = vpop.f32.mrb[0].mxu0
  %1231 = vmatprep.mubr.bf16.mxu0 0
  %1232 = vmatmul.mubr.bf16.gmra.mrb[0].mxu0 %v477
  %v1233 = vpop.f32.mrb[0].mxu0
  %v1234 = vadd.f32 0.0, %v1233
  %v1235 = vpop.f32.mrb[0].mxu0
  %v1236 = vpop.f32.mrb[0].mxu0
  %v1237 = vadd.f32 0.0, %v1236
  %v1238 = vpop.f32.mrb[0].mxu0
  %1239 = vdwg.mxu0
  %v1240 = vlaneseq
  %v1241 = vshrl.u32 %v1240, 7
  %v1242 = vsub.s32 0, %v1241
  %v1243 = vrot.slane %v1158, %v1242
  %v1244 = vadd.f32 %v1243, %v1210
  %v1245 = vadd.f32 %v1243, %v1213
  %v1246 = vadd.f32 %v1243, %v1218
  %v1247 = vadd.f32 %v1243, %v1221
  %v1248 = vadd.f32 %v1243, %v1226
  %v1249 = vadd.f32 %v1243, %v1229
  %v1250 = vadd.f32 %v1243, %v1234
  %v1251 = vadd.f32 %v1243, %v1237
  %v1252 = vld [vmem:[%s2 + $0x68] sm:$0xf]
  %v1253 = vld [vmem:[%s2 + $0x6c] sm:$0xf]
  %v1254 = vld [vmem:[%s2 + $0x70] sm:$0xf]
  %v1255 = vld [vmem:[%s2 + $0x74] sm:$0xf]
  %v1260 = vunpack.c.l.b16 %v1252
  %v1261 = vunpack.c.l.b16 %v1253
  %v1262 = vunpack.c.l.b16 %v1254
  %v1263 = vunpack.c.l.b16 %v1255
  %v1264 = vpack.c.b16 %v1261, %v1260
  %v1265 = vpack.c.b16 %v1263, %v1262
  %1268 = vmatprep.subr.bf16.mxu0 0
  %1269 = vmatpush1.bf16.msra.mxu0 %v1264
  %1270 = vmatprep.subr.bf16.mxu0 0
  %1271 = vmatpush1.bf16.msra.mxu0 %v1265
  %1272 = vmatprep.subr.bf16.mxu0 0
  %1273 = vmatpush1.bf16.msra.mxu0 0
  %1274 = vmatprep.subr.bf16.mxu0 0
  %1275 = vmatpush1.bf16.msra.mxu0 0
  %1276 = vmatprep.subr.bf16.mxu0 0
  %1277 = vmatpush1.bf16.msra.mxu0 0
  %1278 = vmatprep.subr.bf16.mxu0 0
  %1279 = vmatpush1.bf16.msra.mxu0 0
  %1280 = vmatprep.subr.bf16.mxu0 0
  %1281 = vmatpush1.bf16.msra.mxu0 0
  %1282 = vmatprep.subr.bf16.mxu0 0
  %1283 = vmatpush1.bf16.msra.mxu0 0
  %1284 = vmatprep.subr.bf16.mxu0 0
  %1285 = vmatpush1.bf16.msra.mxu0 0
  %1286 = vmatprep.subr.bf16.mxu0 0
  %1287 = vmatpush1.bf16.msra.mxu0 0
  %1288 = vmatprep.subr.bf16.mxu0 0
  %1289 = vmatpush1.bf16.msra.mxu0 0
  %1290 = vmatprep.subr.bf16.mxu0 0
  %1291 = vmatpush1.bf16.msra.mxu0 0
  %1292 = vmatprep.subr.bf16.mxu0 0
  %1293 = vmatpush1.bf16.msra.mxu0 0
  %1294 = vmatprep.subr.bf16.mxu0 0
  %1295 = vmatpush1.bf16.msra.mxu0 0
  %1296 = vmatprep.subr.bf16.mxu0 0
  %1297 = vmatpush1.bf16.msra.mxu0 0
  %1298 = vmatprep.subr.bf16.mxu0 0
  %1299 = vmatpush1.bf16.msra.mxu0 0
  %1300 = vmatprep.mubr.bf16.mxu0 0
  %1301 = vmatmul.mubr.bf16.gmra.mrb[0].mxu0 %v357
  %v1302 = vpop.f32.mrb[0].mxu0
  %v1303 = vadd.f32 0.0, %v1302
  %v1304 = vpop.f32.mrb[0].mxu0
  %v1305 = vpop.f32.mrb[0].mxu0
  %v1306 = vadd.f32 0.0, %v1305
  %v1307 = vpop.f32.mrb[0].mxu0
  %1308 = vmatprep.mubr.bf16.mxu0 0
  %1309 = vmatmul.mubr.bf16.gmra.mrb[0].mxu0 %v360
  %v1310 = vpop.f32.mrb[0].mxu0
  %v1311 = vadd.f32 0.0, %v1310
  %v1312 = vpop.f32.mrb[0].mxu0
  %v1313 = vpop.f32.mrb[0].mxu0
  %v1314 = vadd.f32 0.0, %v1313
  %v1315 = vpop.f32.mrb[0].mxu0
  %1316 = vmatprep.mubr.bf16.mxu0 0
  %1317 = vmatmul.mubr.bf16.gmra.mrb[0].mxu0 %v363
  %v1318 = vpop.f32.mrb[0].mxu0
  %v1319 = vadd.f32 0.0, %v1318
  %v1320 = vpop.f32.mrb[0].mxu0
  %v1321 = vpop.f32.mrb[0].mxu0
  %v1322 = vadd.f32 0.0, %v1321
  %v1323 = vpop.f32.mrb[0].mxu0
  %1324 = vmatprep.mubr.bf16.mxu0 0
  %1325 = vmatmul.mubr.bf16.gmra.mrb[0].mxu0 %v366
  %v1326 = vpop.f32.mrb[0].mxu0
  %v1327 = vadd.f32 0.0, %v1326
  %v1328 = vpop.f32.mrb[0].mxu0
  %v1329 = vpop.f32.mrb[0].mxu0
  %v1330 = vadd.f32 0.0, %v1329
  %v1331 = vpop.f32.mrb[0].mxu0
  %1332 = vdwg.mxu0
  %v1333 = vadd.f32 %v1244, %v1303
  %v1334 = vadd.f32 %v1245, %v1306
  %v1335 = vadd.f32 %v1246, %v1311
  %v1336 = vadd.f32 %v1247, %v1314
  %v1337 = vadd.f32 %v1248, %v1319
  %v1338 = vadd.f32 %v1249, %v1322
  %v1339 = vadd.f32 %v1250, %v1327
  %v1340 = vadd.f32 %v1251, %v1330
  %v1341 = vld [vmem:[%s2 + $0x78] sm:$0xf]
  %v1342 = vld [vmem:[%s2 + $0x7c] sm:$0xf]
  %v1343 = vld [vmem:[%s2 + $0x80] sm:$0xf]
  %v1344 = vld [vmem:[%s2 + $0x84] sm:$0xf]
  %v1345 = vld [vmem:[%s2 + $0x90] sm:$0x1]
  %v1346 = vunpack.c.l.bf16 %v1345
  %v1347 = vpack.c.bf16 %v1150, %v1149
  %v1348 = vpack.c.bf16 %v1152, %v1151
  %v1349 = vpack.c.bf16 %v1154, %v1153
  %v1350 = vpack.c.bf16 %v1156, %v1155
  %1355 = vrot.lane.b32.xlu0 %v1347, 64
  %v1356 = vpop.permute.xlu0 %1355
  %1357 = vrot.lane.b32.xlu0 %v1348, 64
  %v1358 = vpop.permute.xlu0 %1357
  %1359 = vrot.lane.b32.xlu0 %v1349, 64
  %v1360 = vpop.permute.xlu0 %1359
  %1361 = vrot.lane.b32.xlu0 %v1350, 64
  %v1362 = vpop.permute.xlu0 %1361
  %v1367 = vunpack.c.l.b16 %v1341
  %v1368 = vunpack.c.l.b16 %v1342
  %v1369 = vunpack.c.l.b16 %v1343
  %v1370 = vunpack.c.l.b16 %v1344
  %v1371 = vpack.c.b16 %v1368, %v1367
  %v1372 = vpack.c.b16 %v1370, %v1369
  %v1376 = vsel %vm355, %v1356, 0
  %v1379 = vsel %vm355, %v1358, 0
  %v1382 = vsel %vm355, %v1360, 0
  %v1385 = vsel %vm355, %v1362, 0
  %1387 = vmatprep.subr.bf16.mxu0 0
  %1388 = vmatpush1.bf16.msra.mxu0 %v1371
  %1389 = vmatprep.subr.bf16.mxu0 0
  %1390 = vmatpush1.bf16.msra.mxu0 %v1372
  %1391 = vmatprep.subr.bf16.mxu0 0
  %1392 = vmatpush1.bf16.msra.mxu0 0
  %1393 = vmatprep.subr.bf16.mxu0 0
  %1394 = vmatpush1.bf16.msra.mxu0 0
  %1395 = vmatprep.subr.bf16.mxu0 0
  %1396 = vmatpush1.bf16.msra.mxu0 0
  %1397 = vmatprep.subr.bf16.mxu0 0
  %1398 = vmatpush1.bf16.msra.mxu0 0
  %1399 = vmatprep.subr.bf16.mxu0 0
  %1400 = vmatpush1.bf16.msra.mxu0 0
  %1401 = vmatprep.subr.bf16.mxu0 0
  %1402 = vmatpush1.bf16.msra.mxu0 0
  %1403 = vmatprep.subr.bf16.mxu0 0
  %1404 = vmatpush1.bf16.msra.mxu0 0
  %1405 = vmatprep.subr.bf16.mxu0 0
  %1406 = vmatpush1.bf16.msra.mxu0 0
  %1407 = vmatprep.subr.bf16.mxu0 0
  %1408 = vmatpush1.bf16.msra.mxu0 0
  %1409 = vmatprep.subr.bf16.mxu0 0
  %1410 = vmatpush1.bf16.msra.mxu0 0
  %1411 = vmatprep.subr.bf16.mxu0 0
  %1412 = vmatpush1.bf16.msra.mxu0 0
  %1413 = vmatprep.subr.bf16.mxu0 0
  %1414 = vmatpush1.bf16.msra.mxu0 0
  %1415 = vmatprep.subr.bf16.mxu0 0
  %1416 = vmatpush1.bf16.msra.mxu0 0
  %1417 = vmatprep.subr.bf16.mxu0 0
  %1418 = vmatpush1.bf16.msra.mxu0 0
  %1419 = vmatprep.mubr.bf16.mxu0 0
  %1420 = vmatmul.mubr.bf16.gmra.mrb[0].mxu0 %v1376
  %v1421 = vpop.f32.mrb[0].mxu0
  %v1422 = vadd.f32 0.0, %v1421
  %v1423 = vpop.f32.mrb[0].mxu0
  %v1424 = vpop.f32.mrb[0].mxu0
  %v1425 = vadd.f32 0.0, %v1424
  %v1426 = vpop.f32.mrb[0].mxu0
  %1427 = vmatprep.mubr.bf16.mxu0 0
  %1428 = vmatmul.mubr.bf16.gmra.mrb[0].mxu0 %v1379
  %v1429 = vpop.f32.mrb[0].mxu0
  %v1430 = vadd.f32 0.0, %v1429
  %v1431 = vpop.f32.mrb[0].mxu0
  %v1432 = vpop.f32.mrb[0].mxu0
  %v1433 = vadd.f32 0.0, %v1432
  %v1434 = vpop.f32.mrb[0].mxu0
  %1435 = vmatprep.mubr.bf16.mxu0 0
  %1436 = vmatmul.mubr.bf16.gmra.mrb[0].mxu0 %v1382
  %v1437 = vpop.f32.mrb[0].mxu0
  %v1438 = vadd.f32 0.0, %v1437
  %v1439 = vpop.f32.mrb[0].mxu0
  %v1440 = vpop.f32.mrb[0].mxu0
  %v1441 = vadd.f32 0.0, %v1440
  %v1442 = vpop.f32.mrb[0].mxu0
  %1443 = vmatprep.mubr.bf16.mxu0 0
  %1444 = vmatmul.mubr.bf16.gmra.mrb[0].mxu0 %v1385
  %v1445 = vpop.f32.mrb[0].mxu0
  %v1446 = vadd.f32 0.0, %v1445
  %v1447 = vpop.f32.mrb[0].mxu0
  %v1448 = vpop.f32.mrb[0].mxu0
  %v1449 = vadd.f32 0.0, %v1448
  %v1450 = vpop.f32.mrb[0].mxu0
  %1451 = vdwg.mxu0
  %v1452 = vadd.f32 %v1333, %v1422
  %v1453 = vadd.f32 %v1334, %v1425
  %v1454 = vadd.f32 %v1335, %v1430
  %v1455 = vadd.f32 %v1336, %v1433
  %v1456 = vadd.f32 %v1337, %v1438
  %v1457 = vadd.f32 %v1338, %v1441
  %v1458 = vadd.f32 %v1339, %v1446
  %v1459 = vadd.f32 %v1340, %v1449
  %v1460 = vxor.u32 %v1452, 2147483648
  %v1461 = vxor.u32 %v1453, 2147483648
  %v1462 = vxor.u32 %v1454, 2147483648
  %v1463 = vxor.u32 %v1455, 2147483648
  %v1464 = vxor.u32 %v1456, 2147483648
  %v1465 = vxor.u32 %v1457, 2147483648
  %v1466 = vxor.u32 %v1458, 2147483648
  %v1467 = vxor.u32 %v1459, 2147483648
  %v1468 = vmul.f32 %v1460, 1.442695
  %v1469 = vpow.pop %v1468
  %v1470 = vmul.f32 %v1461, 1.442695
  %v1471 = vpow.pop %v1470
  %v1472 = vmul.f32 %v1462, 1.442695
  %v1473 = vpow.pop %v1472
  %v1474 = vmul.f32 %v1463, 1.442695
  %v1475 = vpow.pop %v1474
  %v1476 = vmul.f32 %v1464, 1.442695
  %v1477 = vpow.pop %v1476
  %v1478 = vmul.f32 %v1465, 1.442695
  %v1479 = vpow.pop %v1478
  %v1480 = vmul.f32 %v1466, 1.442695
  %v1481 = vpow.pop %v1480
  %v1482 = vmul.f32 %v1467, 1.442695
  %v1483 = vpow.pop %v1482
  %v1484 = vadd.f32 %v1469, 1.0
  %v1485 = vadd.f32 %v1471, 1.0
  %v1486 = vadd.f32 %v1473, 1.0
  %v1487 = vadd.f32 %v1475, 1.0
  %v1488 = vadd.f32 %v1477, 1.0
  %v1489 = vadd.f32 %v1479, 1.0
  %v1490 = vadd.f32 %v1481, 1.0
  %v1491 = vadd.f32 %v1483, 1.0
  %v1492 = vrcp.pop %v1484
  %v1493 = vmul.f32 1.0, %v1492
  %v1494 = vrcp.pop %v1485
  %v1495 = vmul.f32 1.0, %v1494
  %v1496 = vrcp.pop %v1486
  %v1497 = vmul.f32 1.0, %v1496
  %v1498 = vrcp.pop %v1487
  %v1499 = vmul.f32 1.0, %v1498
  %v1500 = vrcp.pop %v1488
  %v1501 = vmul.f32 1.0, %v1500
  %v1502 = vrcp.pop %v1489
  %v1503 = vmul.f32 1.0, %v1502
  %v1504 = vrcp.pop %v1490
  %v1505 = vmul.f32 1.0, %v1504
  %v1506 = vrcp.pop %v1491
  %v1507 = vmul.f32 1.0, %v1506
  %v1508 = vlaneseq
  %v1509 = vshrl.u32 %v1508, 7
  %v1510 = vsub.s32 0, %v1509
  %v1511 = vrot.slane %v1346, %v1510
  %1513 = vrot.lane.b32.xlu0 %v1511, 64
  %v1514 = vpop.permute.xlu0 %1513
  %v1516 = vadd.f32 %v1422, %v1514
  %v1517 = vadd.f32 %v1425, %v1514
  %v1518 = vadd.f32 %v1430, %v1514
  %v1519 = vadd.f32 %v1433, %v1514
  %v1520 = vadd.f32 %v1438, %v1514
  %v1521 = vadd.f32 %v1441, %v1514
  %v1522 = vadd.f32 %v1446, %v1514
  %v1523 = vadd.f32 %v1449, %v1514
  %1532 = vrot.lane.b32.xlu0 %v1516, 64
  %v1533 = vpop.permute.xlu0 %1532
  %1534 = vrot.lane.b32.xlu0 %v1517, 64
  %v1535 = vpop.permute.xlu0 %1534
  %1536 = vrot.lane.b32.xlu0 %v1518, 64
  %v1537 = vpop.permute.xlu0 %1536
  %1538 = vrot.lane.b32.xlu0 %v1519, 64
  %v1539 = vpop.permute.xlu0 %1538
  %1540 = vrot.lane.b32.xlu0 %v1520, 64
  %v1541 = vpop.permute.xlu0 %1540
  %1542 = vrot.lane.b32.xlu0 %v1521, 64
  %v1543 = vpop.permute.xlu0 %1542
  %1544 = vrot.lane.b32.xlu0 %v1522, 64
  %v1545 = vpop.permute.xlu0 %1544
  %1546 = vrot.lane.b32.xlu0 %v1523, 64
  %v1547 = vpop.permute.xlu0 %1546
  %v1556 = vmul.f32 %v1493, %v1533
  %v1557 = vmul.f32 %v1495, %v1535
  %v1558 = vmul.f32 %v1497, %v1537
  %v1559 = vmul.f32 %v1499, %v1539
  %v1560 = vmul.f32 %v1501, %v1541
  %v1561 = vmul.f32 %v1503, %v1543
  %v1562 = vmul.f32 %v1505, %v1545
  %v1563 = vmul.f32 %v1507, %v1547
  %1572 = vrot.lane.b32.xlu0 %v1556, 64
  %v1573 = vpop.permute.xlu0 %1572
  %1574 = vrot.lane.b32.xlu0 %v1557, 64
  %v1575 = vpop.permute.xlu0 %1574
  %1576 = vrot.lane.b32.xlu0 %v1558, 64
  %v1577 = vpop.permute.xlu0 %1576
  %1578 = vrot.lane.b32.xlu0 %v1559, 64
  %v1579 = vpop.permute.xlu0 %1578
  %1580 = vrot.lane.b32.xlu0 %v1560, 64
  %v1581 = vpop.permute.xlu0 %1580
  %1582 = vrot.lane.b32.xlu0 %v1561, 64
  %v1583 = vpop.permute.xlu0 %1582
  %1584 = vrot.lane.b32.xlu0 %v1562, 64
  %v1585 = vpop.permute.xlu0 %1584
  %1586 = vrot.lane.b32.xlu0 %v1563, 64
  %v1587 = vpop.permute.xlu0 %1586
  %v1596 = vadd.f32 %v1333, %v1573
  %v1597 = vadd.f32 %v1334, %v1575
  %v1598 = vadd.f32 %v1335, %v1577
  %v1599 = vadd.f32 %v1336, %v1579
  %v1600 = vadd.f32 %v1337, %v1581
  %v1601 = vadd.f32 %v1338, %v1583
  %v1602 = vadd.f32 %v1339, %v1585
  %v1603 = vadd.f32 %v1340, %v1587
  %v1604 = vtanh.pop %v1596
  %v1605 = vtanh.pop %v1597
  %v1606 = vtanh.pop %v1598
  %v1607 = vtanh.pop %v1599
  %v1608 = vtanh.pop %v1600
  %v1609 = vtanh.pop %v1601
  %v1610 = vtanh.pop %v1602
  %v1611 = vtanh.pop %v1603
  %v1612 = vsub.f32 %v1149, %v1604
  %v1613 = vsub.f32 %v1150, %v1605
  %v1614 = vsub.f32 %v1151, %v1606
  %v1615 = vsub.f32 %v1152, %v1607
  %v1616 = vsub.f32 %v1153, %v1608
  %v1617 = vsub.f32 %v1154, %v1609
  %v1618 = vsub.f32 %v1155, %v1610
  %v1619 = vsub.f32 %v1156, %v1611
  %1628 = vrot.lane.b32.xlu0 %v1612, 96
  %v1629 = vpop.permute.xlu0 %1628
  %1630 = vrot.lane.b32.xlu0 %v1613, 96
  %v1631 = vpop.permute.xlu0 %1630
  %1632 = vrot.lane.b32.xlu0 %v1614, 96
  %v1633 = vpop.permute.xlu0 %1632
  %1634 = vrot.lane.b32.xlu0 %v1615, 96
  %v1635 = vpop.permute.xlu0 %1634
  %1636 = vrot.lane.b32.xlu0 %v1616, 96
  %v1637 = vpop.permute.xlu0 %1636
  %1638 = vrot.lane.b32.xlu0 %v1617, 96
  %v1639 = vpop.permute.xlu0 %1638
  %1640 = vrot.lane.b32.xlu0 %v1618, 96
  %v1641 = vpop.permute.xlu0 %1640
  %1642 = vrot.lane.b32.xlu0 %v1619, 96
  %v1643 = vpop.permute.xlu0 %1642
  %v1652 = vmul.f32 %v1493, %v1629
  %v1653 = vmul.f32 %v1495, %v1631
  %v1654 = vmul.f32 %v1497, %v1633
  %v1655 = vmul.f32 %v1499, %v1635
  %v1656 = vmul.f32 %v1501, %v1637
  %v1657 = vmul.f32 %v1503, %v1639
  %v1658 = vmul.f32 %v1505, %v1641
  %v1659 = vmul.f32 %v1507, %v1643
  %1668 = vrot.lane.b32.xlu0 %v1652, 32
  %v1669 = vpop.permute.xlu0 %1668
  %1670 = vrot.lane.b32.xlu0 %v1653, 32
  %v1671 = vpop.permute.xlu0 %1670
  %1672 = vrot.lane.b32.xlu0 %v1654, 32
  %v1673 = vpop.permute.xlu0 %1672
  %1674 = vrot.lane.b32.xlu0 %v1655, 32
  %v1675 = vpop.permute.xlu0 %1674
  %1676 = vrot.lane.b32.xlu0 %v1656, 32
  %v1677 = vpop.permute.xlu0 %1676
  %1678 = vrot.lane.b32.xlu0 %v1657, 32
  %v1679 = vpop.permute.xlu0 %1678
  %1680 = vrot.lane.b32.xlu0 %v1658, 32
  %v1681 = vpop.permute.xlu0 %1680
  %1682 = vrot.lane.b32.xlu0 %v1659, 32
  %v1683 = vpop.permute.xlu0 %1682
  %v1692 = vadd.f32 %v1604, %v1669
  %v1693 = vadd.f32 %v1605, %v1671
  %v1694 = vadd.f32 %v1606, %v1673
  %v1695 = vadd.f32 %v1607, %v1675
  %v1696 = vadd.f32 %v1608, %v1677
  %v1697 = vadd.f32 %v1609, %v1679
  %v1698 = vadd.f32 %v1610, %v1681
  %v1699 = vadd.f32 %v1611, %v1683
  %v1700 = vpack.c.bf16 %v1693, %v1692
  %v1701 = vpack.c.bf16 %v1695, %v1694
  %v1702 = vpack.c.bf16 %v1697, %v1696
  %v1703 = vpack.c.bf16 %v1699, %v1698
  %1708 = vrot.lane.b32.xlu0 %v1700, 64
  %v1709 = vpop.permute.xlu0 %1708
  %1710 = vrot.lane.b32.xlu0 %v1701, 64
  %v1711 = vpop.permute.xlu0 %1710
  %1712 = vrot.lane.b32.xlu0 %v1702, 64
  %v1713 = vpop.permute.xlu0 %1712
  %1714 = vrot.lane.b32.xlu0 %v1703, 64
  %v1715 = vpop.permute.xlu0 %1714
  %v1717 = vsel %vm355, %v1709, 0
  %v1720 = vsel %vm355, %v1711, 0
  %v1723 = vsel %vm355, %v1713, 0
  %v1726 = vsel %vm355, %v1715, 0
  %1728 = vmatprep.subr.bf16.mxu0 0
  %1729 = vmatpush1.bf16.msra.mxu0 %v1371
  %1730 = vmatprep.subr.bf16.mxu0 0
  %1731 = vmatpush1.bf16.msra.mxu0 %v1372
  %1732 = vmatprep.subr.bf16.mxu0 0
  %1733 = vmatpush1.bf16.msra.mxu0 0
  %1734 = vmatprep.subr.bf16.mxu0 0
  %1735 = vmatpush1.bf16.msra.mxu0 0
  %1736 = vmatprep.subr.bf16.mxu0 0
  %1737 = vmatpush1.bf16.msra.mxu0 0
  %1738 = vmatprep.subr.bf16.mxu0 0
  %1739 = vmatpush1.bf16.msra.mxu0 0
  %1740 = vmatprep.subr.bf16.mxu0 0
  %1741 = vmatpush1.bf16.msra.mxu0 0
  %1742 = vmatprep.subr.bf16.mxu0 0
  %1743 = vmatpush1.bf16.msra.mxu0 0
  %1744 = vmatprep.subr.bf16.mxu0 0
  %1745 = vmatpush1.bf16.msra.mxu0 0
  %1746 = vmatprep.subr.bf16.mxu0 0
  %1747 = vmatpush1.bf16.msra.mxu0 0
  %1748 = vmatprep.subr.bf16.mxu0 0
  %1749 = vmatpush1.bf16.msra.mxu0 0
  %1750 = vmatprep.subr.bf16.mxu0 0
  %1751 = vmatpush1.bf16.msra.mxu0 0
  %1752 = vmatprep.subr.bf16.mxu0 0
  %1753 = vmatpush1.bf16.msra.mxu0 0
  %1754 = vmatprep.subr.bf16.mxu0 0
  %1755 = vmatpush1.bf16.msra.mxu0 0
  %1756 = vmatprep.subr.bf16.mxu0 0
  %1757 = vmatpush1.bf16.msra.mxu0 0
  %1758 = vmatprep.subr.bf16.mxu0 0
  %1759 = vmatpush1.bf16.msra.mxu0 0
  %1760 = vmatprep.mubr.bf16.mxu0 0
  %1761 = vmatmul.mubr.bf16.gmra.mrb[0].mxu0 %v1717
  %v1762 = vpop.f32.mrb[0].mxu0
  %v1763 = vadd.f32 0.0, %v1762
  %v1764 = vpop.f32.mrb[0].mxu0
  %v1765 = vpop.f32.mrb[0].mxu0
  %v1766 = vadd.f32 0.0, %v1765
  %v1767 = vpop.f32.mrb[0].mxu0
  %1768 = vmatprep.mubr.bf16.mxu0 0
  %1769 = vmatmul.mubr.bf16.gmra.mrb[0].mxu0 %v1720
  %v1770 = vpop.f32.mrb[0].mxu0
  %v1771 = vadd.f32 0.0, %v1770
  %v1772 = vpop.f32.mrb[0].mxu0
  %v1773 = vpop.f32.mrb[0].mxu0
  %v1774 = vadd.f32 0.0, %v1773
  %v1775 = vpop.f32.mrb[0].mxu0
  %1776 = vmatprep.mubr.bf16.mxu0 0
  %1777 = vmatmul.mubr.bf16.gmra.mrb[0].mxu0 %v1723
  %v1778 = vpop.f32.mrb[0].mxu0
  %v1779 = vadd.f32 0.0, %v1778
  %v1780 = vpop.f32.mrb[0].mxu0
  %v1781 = vpop.f32.mrb[0].mxu0
  %v1782 = vadd.f32 0.0, %v1781
  %v1783 = vpop.f32.mrb[0].mxu0
  %1784 = vmatprep.mubr.bf16.mxu0 0
  %1785 = vmatmul.mubr.bf16.gmra.mrb[0].mxu0 %v1726
  %v1786 = vpop.f32.mrb[0].mxu0
  %v1787 = vadd.f32 0.0, %v1786
  %v1788 = vpop.f32.mrb[0].mxu0
  %v1789 = vpop.f32.mrb[0].mxu0
  %v1790 = vadd.f32 0.0, %v1789
  %v1791 = vpop.f32.mrb[0].mxu0
  %1792 = vdwg.mxu0
  %v1793 = vadd.f32 %v1333, %v1763
  %v1794 = vadd.f32 %v1334, %v1766
  %v1795 = vadd.f32 %v1335, %v1771
  %v1796 = vadd.f32 %v1336, %v1774
  %v1797 = vadd.f32 %v1337, %v1779
  %v1798 = vadd.f32 %v1338, %v1782
  %v1799 = vadd.f32 %v1339, %v1787
  %v1800 = vadd.f32 %v1340, %v1790
  %v1801 = vxor.u32 %v1793, 2147483648
  %v1802 = vxor.u32 %v1794, 2147483648
  %v1803 = vxor.u32 %v1795, 2147483648
  %v1804 = vxor.u32 %v1796, 2147483648
  %v1805 = vxor.u32 %v1797, 2147483648
  %v1806 = vxor.u32 %v1798, 2147483648
  %v1807 = vxor.u32 %v1799, 2147483648
  %v1808 = vxor.u32 %v1800, 2147483648
  %v1809 = vmul.f32 %v1801, 1.442695
  %v1810 = vpow.pop %v1809
  %v1811 = vmul.f32 %v1802, 1.442695
  %v1812 = vpow.pop %v1811
  %v1813 = vmul.f32 %v1803, 1.442695
  %v1814 = vpow.pop %v1813
  %v1815 = vmul.f32 %v1804, 1.442695
  %v1816 = vpow.pop %v1815
  %v1817 = vmul.f32 %v1805, 1.442695
  %v1818 = vpow.pop %v1817
  %v1819 = vmul.f32 %v1806, 1.442695
  %v1820 = vpow.pop %v1819
  %v1821 = vmul.f32 %v1807, 1.442695
  %v1822 = vpow.pop %v1821
  %v1823 = vmul.f32 %v1808, 1.442695
  %v1824 = vpow.pop %v1823
  %v1825 = vadd.f32 %v1810, 1.0
  %v1826 = vadd.f32 %v1812, 1.0
  %v1827 = vadd.f32 %v1814, 1.0
  %v1828 = vadd.f32 %v1816, 1.0
  %v1829 = vadd.f32 %v1818, 1.0
  %v1830 = vadd.f32 %v1820, 1.0
  %v1831 = vadd.f32 %v1822, 1.0
  %v1832 = vadd.f32 %v1824, 1.0
  %v1833 = vrcp.pop %v1825
  %v1834 = vmul.f32 1.0, %v1833
  %v1835 = vrcp.pop %v1826
  %v1836 = vmul.f32 1.0, %v1835
  %v1837 = vrcp.pop %v1827
  %v1838 = vmul.f32 1.0, %v1837
  %v1839 = vrcp.pop %v1828
  %v1840 = vmul.f32 1.0, %v1839
  %v1841 = vrcp.pop %v1829
  %v1842 = vmul.f32 1.0, %v1841
  %v1843 = vrcp.pop %v1830
  %v1844 = vmul.f32 1.0, %v1843
  %v1845 = vrcp.pop %v1831
  %v1846 = vmul.f32 1.0, %v1845
  %v1847 = vrcp.pop %v1832
  %v1848 = vmul.f32 1.0, %v1847
  %v1849 = vadd.f32 %v1763, %v1514
  %v1850 = vadd.f32 %v1766, %v1514
  %v1851 = vadd.f32 %v1771, %v1514
  %v1852 = vadd.f32 %v1774, %v1514
  %v1853 = vadd.f32 %v1779, %v1514
  %v1854 = vadd.f32 %v1782, %v1514
  %v1855 = vadd.f32 %v1787, %v1514
  %v1856 = vadd.f32 %v1790, %v1514
  %1865 = vrot.lane.b32.xlu0 %v1849, 64
  %v1866 = vpop.permute.xlu0 %1865
  %1867 = vrot.lane.b32.xlu0 %v1850, 64
  %v1868 = vpop.permute.xlu0 %1867
  %1869 = vrot.lane.b32.xlu0 %v1851, 64
  %v1870 = vpop.permute.xlu0 %1869
  %1871 = vrot.lane.b32.xlu0 %v1852, 64
  %v1872 = vpop.permute.xlu0 %1871
  %1873 = vrot.lane.b32.xlu0 %v1853, 64
  %v1874 = vpop.permute.xlu0 %1873
  %1875 = vrot.lane.b32.xlu0 %v1854, 64
  %v1876 = vpop.permute.xlu0 %1875
  %1877 = vrot.lane.b32.xlu0 %v1855, 64
  %v1878 = vpop.permute.xlu0 %1877
  %1879 = vrot.lane.b32.xlu0 %v1856, 64
  %v1880 = vpop.permute.xlu0 %1879
  %v1889 = vmul.f32 %v1834, %v1866
  %v1890 = vmul.f32 %v1836, %v1868
  %v1891 = vmul.f32 %v1838, %v1870
  %v1892 = vmul.f32 %v1840, %v1872
  %v1893 = vmul.f32 %v1842, %v1874
  %v1894 = vmul.f32 %v1844, %v1876
  %v1895 = vmul.f32 %v1846, %v1878
  %v1896 = vmul.f32 %v1848, %v1880
  %1905 = vrot.lane.b32.xlu0 %v1889, 64
  %v1906 = vpop.permute.xlu0 %1905
  %1907 = vrot.lane.b32.xlu0 %v1890, 64
  %v1908 = vpop.permute.xlu0 %1907
  %1909 = vrot.lane.b32.xlu0 %v1891, 64
  %v1910 = vpop.permute.xlu0 %1909
  %1911 = vrot.lane.b32.xlu0 %v1892, 64
  %v1912 = vpop.permute.xlu0 %1911
  %1913 = vrot.lane.b32.xlu0 %v1893, 64
  %v1914 = vpop.permute.xlu0 %1913
  %1915 = vrot.lane.b32.xlu0 %v1894, 64
  %v1916 = vpop.permute.xlu0 %1915
  %1917 = vrot.lane.b32.xlu0 %v1895, 64
  %v1918 = vpop.permute.xlu0 %1917
  %1919 = vrot.lane.b32.xlu0 %v1896, 64
  %v1920 = vpop.permute.xlu0 %1919
  %v1929 = vadd.f32 %v1333, %v1906
  %v1930 = vadd.f32 %v1334, %v1908
  %v1931 = vadd.f32 %v1335, %v1910
  %v1932 = vadd.f32 %v1336, %v1912
  %v1933 = vadd.f32 %v1337, %v1914
  %v1934 = vadd.f32 %v1338, %v1916
  %v1935 = vadd.f32 %v1339, %v1918
  %v1936 = vadd.f32 %v1340, %v1920
  %v1937 = vtanh.pop %v1929
  %v1938 = vtanh.pop %v1930
  %v1939 = vtanh.pop %v1931
  %v1940 = vtanh.pop %v1932
  %v1941 = vtanh.pop %v1933
  %v1942 = vtanh.pop %v1934
  %v1943 = vtanh.pop %v1935
  %v1944 = vtanh.pop %v1936
  %v1945 = vsub.f32 %v1692, %v1937
  %v1946 = vsub.f32 %v1693, %v1938
  %v1947 = vsub.f32 %v1694, %v1939
  %v1948 = vsub.f32 %v1695, %v1940
  %v1949 = vsub.f32 %v1696, %v1941
  %v1950 = vsub.f32 %v1697, %v1942
  %v1951 = vsub.f32 %v1698, %v1943
  %v1952 = vsub.f32 %v1699, %v1944
  %1961 = vrot.lane.b32.xlu0 %v1945, 96
  %v1962 = vpop.permute.xlu0 %1961
  %1963 = vrot.lane.b32.xlu0 %v1946, 96
  %v1964 = vpop.permute.xlu0 %1963
  %1965 = vrot.lane.b32.xlu0 %v1947, 96
  %v1966 = vpop.permute.xlu0 %1965
  %1967 = vrot.lane.b32.xlu0 %v1948, 96
  %v1968 = vpop.permute.xlu0 %1967
  %1969 = vrot.lane.b32.xlu0 %v1949, 96
  %v1970 = vpop.permute.xlu0 %1969
  %1971 = vrot.lane.b32.xlu0 %v1950, 96
  %v1972 = vpop.permute.xlu0 %1971
  %1973 = vrot.lane.b32.xlu0 %v1951, 96
  %v1974 = vpop.permute.xlu0 %1973
  %1975 = vrot.lane.b32.xlu0 %v1952, 96
  %v1976 = vpop.permute.xlu0 %1975
  %v1985 = vmul.f32 %v1834, %v1962
  %v1986 = vmul.f32 %v1836, %v1964
  %v1987 = vmul.f32 %v1838, %v1966
  %v1988 = vmul.f32 %v1840, %v1968
  %v1989 = vmul.f32 %v1842, %v1970
  %v1990 = vmul.f32 %v1844, %v1972
  %v1991 = vmul.f32 %v1846, %v1974
  %v1992 = vmul.f32 %v1848, %v1976
  %2001 = vrot.lane.b32.xlu0 %v1985, 32
  %v2002 = vpop.permute.xlu0 %2001
  %2003 = vrot.lane.b32.xlu0 %v1986, 32
  %v2004 = vpop.permute.xlu0 %2003
  %2005 = vrot.lane.b32.xlu0 %v1987, 32
  %v2006 = vpop.permute.xlu0 %2005
  %2007 = vrot.lane.b32.xlu0 %v1988, 32
  %v2008 = vpop.permute.xlu0 %2007
  %2009 = vrot.lane.b32.xlu0 %v1989, 32
  %v2010 = vpop.permute.xlu0 %2009
  %2011 = vrot.lane.b32.xlu0 %v1990, 32
  %v2012 = vpop.permute.xlu0 %2011
  %2013 = vrot.lane.b32.xlu0 %v1991, 32
  %v2014 = vpop.permute.xlu0 %2013
  %2015 = vrot.lane.b32.xlu0 %v1992, 32
  %v2016 = vpop.permute.xlu0 %2015
  %v2025 = vadd.f32 %v1937, %v2002
  %v2026 = vadd.f32 %v1938, %v2004
  %v2027 = vadd.f32 %v1939, %v2006
  %v2028 = vadd.f32 %v1940, %v2008
  %v2029 = vadd.f32 %v1941, %v2010
  %v2030 = vadd.f32 %v1942, %v2012
  %v2031 = vadd.f32 %v1943, %v2014
  %v2032 = vadd.f32 %v1944, %v2016
  %2041 = vrot.lane.b32.xlu0 %v2025, 64
  %v2042 = vpop.permute.xlu0 %2041
  %2043 = vrot.lane.b32.xlu0 %v2026, 64
  %v2044 = vpop.permute.xlu0 %2043
  %2045 = vrot.lane.b32.xlu0 %v2027, 64
  %v2046 = vpop.permute.xlu0 %2045
  %2047 = vrot.lane.b32.xlu0 %v2028, 64
  %v2048 = vpop.permute.xlu0 %2047
  %2049 = vrot.lane.b32.xlu0 %v2029, 64
  %v2050 = vpop.permute.xlu0 %2049
  %2051 = vrot.lane.b32.xlu0 %v2030, 64
  %v2052 = vpop.permute.xlu0 %2051
  %2053 = vrot.lane.b32.xlu0 %v2031, 64
  %v2054 = vpop.permute.xlu0 %2053
  %2055 = vrot.lane.b32.xlu0 %v2032, 64
  %v2056 = vpop.permute.xlu0 %2055
  %2065 = vst.msk [vmem:[%s3] sm:$0xff] %vm355, %v2042
  %2066 = vst.msk [vmem:[%s3 + $0x8] sm:$0xff] %vm355, %v2044
  %2067 = vst.msk [vmem:[%s3 + $0x10] sm:$0xff] %vm355, %v2046
  %2068 = vst.msk [vmem:[%s3 + $0x18] sm:$0xff] %vm355, %v2048
  %2069 = vst.msk [vmem:[%s3 + $0x20] sm:$0xff] %vm355, %v2050
  %2070 = vst.msk [vmem:[%s3 + $0x28] sm:$0xff] %vm355, %v2052
  %2071 = vst.msk [vmem:[%s3 + $0x30] sm:$0xff] %vm355, %v2054
  %2072 = vst.msk [vmem:[%s3 + $0x38] sm:$0xff] %vm355, %v2056
  // Predicated region
  $region14: #{tpu_custom_call.1} parent=0 // pred_check
    _
  $region15: #{tpu_custom_call.1} parent=0 // pred_check_branch
    %2074 = sbr.rel (0) target = $region17
  $region16: #{tpu_custom_call.1} parent=0 // pred_region
    _
  $region17: #{tpu_custom_call.1} parent=0 // pred_fallthru
    _
  // Predicated region
  $region18: #{tpu_custom_call.1} parent=0 // pred_check
    _
  $region19: #{tpu_custom_call.1} parent=0 // pred_check_branch
    %2076 = sbr.rel (0) target = $region21
  $region20: #{tpu_custom_call.1} parent=0 // pred_region
    _
  $region21: #{tpu_custom_call.1} parent=0 // pred_fallthru
    _

</llo_original>
